<compile_context>
chip_gen: v6e
topology: v6e:2x2x1
jax: 0.10.0
libtpu: 0.0.40
codegen_flags: <defaults>
</compile_context>

<pallas_src>
import functools

import jax
import jax.numpy as jnp
from jax.experimental import pallas as pl
from jax.experimental.pallas import tpu as pltpu


def _lstm_chunk_kernel(ct, n_chains, gx_ref, whh_hbm, h1_ref,
                       h_st, c_st, whh_vmem, whh_sem):
    """One grid step = `ct` fused LSTM timesteps for one batch block.

    gx_ref  : (BB, ct*4H)  precomputed x@W_ih^T + bias, gate order (i, f, o, g)
    whh_hbm : (H, 4H)      recurrent weights (transposed), left in HBM
    h1_ref  : (BB, ct*H)   hidden-state output slab for this chunk
    h_st, c_st : (BB, H)   persistent recurrent state (VMEM scratch)
    whh_vmem   : (H, 4H)   single-copy VMEM residence of W_hh^T
    """
    c = pl.program_id(1)

    # NOTE(correctness): the state carry relies on the time-chunk axis
    # (grid axis 1) staying the INNERMOST grid axis and marked "arbitrary"
    # (sequential). Only the batch axis (axis 0) may be megacore-sharded.
    @pl.when(c == 0)
    def _():
        h_st[...] = jnp.zeros_like(h_st)
        c_st[...] = jnp.zeros_like(c_st)
        # Fetch W_hh^T once per batch block into a single VMEM scratch copy
        # (instead of a double-buffered BlockSpec input).  Doing it at c==0
        # of *every* batch block keeps each megacore core's scratch valid.
        cp = pltpu.make_async_copy(whh_hbm, whh_vmem, whh_sem)
        cp.start()
        cp.wait()

    H = h_st.shape[-1]
    H4 = 4 * H
    BB = h_st.shape[0]
    rows = BB // n_chains

    whh = whh_vmem[...]            # (H, 4H), constant across the chunk
    # TODO(synk): if the bundle dump shows W_hh re-pushed through the MXU
    # every timestep, drive the MXU explicitly (pltpu.matmul_push_rhs once per
    # chunk + matmul_acc_lhs / matmul_pop per step) to amortize the weight
    # load over `ct` timesteps.

    # n_chains independent recurrent chains over disjoint batch rows.
    hs = [h_st[ch * rows:(ch + 1) * rows, :] for ch in range(n_chains)]
    cs = [c_st[ch * rows:(ch + 1) * rows, :] for ch in range(n_chains)]

    # Statically unrolled fused timesteps.  gx is loaded PER TIMESTEP from the
    # pipelined VMEM block (not materialized for the whole chunk) so the live
    # vreg set stays bounded to one timestep per chain.
    for s in range(ct):
        for ch in range(n_chains):
            r0, r1 = ch * rows, (ch + 1) * rows
            gx_t = gx_ref[r0:r1, s * H4:(s + 1) * H4].astype(jnp.float32)
            gates = gx_t + jnp.dot(hs[ch].astype(whh.dtype), whh,
                                   preferred_element_type=jnp.float32)
            # Gate order (i, f, o, g): one sigmoid over 3H lanes and one tanh
            # over H lanes per step (2 EUP launches instead of 5).
            # Layout is lane-optimal for H % 128 == 0.
            # TODO(synk): for H < 128 pack several timesteps of a gate per
            # vreg to recover lane occupancy.
            sg = jax.nn.sigmoid(gates[:, :3 * H])
            g_g = jnp.tanh(gates[:, 3 * H:])
            i_g = sg[:, 0 * H:1 * H]
            f_g = sg[:, 1 * H:2 * H]
            o_g = sg[:, 2 * H:3 * H]
            cs[ch] = f_g * cs[ch] + i_g * g_g
            hs[ch] = o_g * jnp.tanh(cs[ch])
            # Static lane/sublane-offset store into the (BB, ct*H) output
            # slab; HBM writeback is one lane-dense DMA per grid step.
            h1_ref[r0:r1, s * H:(s + 1) * H] = hs[ch].astype(h1_ref.dtype)

    for ch in range(n_chains):
        h_st[ch * rows:(ch + 1) * rows, :] = hs[ch]
        c_st[ch * rows:(ch + 1) * rows, :] = cs[ch]


def text_subnet_forward(sequence, params, *, chunk=None, batch_block=None,
                        gx_dtype=jnp.bfloat16,
                        recurrent_mxu_dtype=jnp.bfloat16):
    """sequence: (B, T, D) float32 (batch_first, like the PyTorch module).

    Returns (h1, h_final):  h1: (B, T, H) f32,  h_final: (1, B, H) f32.
    Pass gx_dtype=recurrent_mxu_dtype=jnp.float32 for bit-accurate f32 math.
    """
    w_ih, w_hh, b_ih, b_hh = params          # (4H, D), (4H, H), (4H,), (4H,)
    B, T, D = sequence.shape
    H4 = w_ih.shape[0]
    H = H4 // 4

    # Permute gate blocks from PyTorch order (i, f, g, o) to (i, f, o, g) so
    # the three sigmoid gates are contiguous in the lane dimension.
    perm = jnp.concatenate([jnp.arange(0, 2 * H),
                            jnp.arange(3 * H, 4 * H),
                            jnp.arange(2 * H, 3 * H)])
    w_ih_p = w_ih[perm].astype(jnp.float32)          # (4H, D)
    w_hh_p = w_hh[perm].astype(jnp.float32)          # (4H, H)
    bias_p = (b_ih + b_hh)[perm].astype(jnp.float32)

    # Hoisted input projection (f32 accumulate) stored as gx_dtype: gx is the
    # dominant HBM stream (written by XLA, re-read by the kernel); bf16 halves
    # both directions and the per-chunk VMEM footprint.
    gx = jnp.einsum('btd,gd->btg', sequence.astype(jnp.float32), w_ih_p) + bias_p
    gx = gx.astype(gx_dtype).reshape(B, T * H4)      # (B, T*4H), free reshape
    whh_t = jnp.transpose(w_hh_p).astype(recurrent_mxu_dtype)   # (H, 4H)

    # --- batch block: split so the "parallel" batch axis can shard across the
    # two TensorCores on v7x; each block must be a multiple of 8 sublanes
    # (or the whole batch).
    if batch_block is None:
        batch_block = B // 2 if (B >= 16 and B % 16 == 0) else B
    assert B % batch_block == 0
    assert batch_block == B or batch_block % 8 == 0
    n_b = B // batch_block

    # Two independent recurrent chains per batch block when each chain stays
    # sublane-aligned (>= 8 rows per chain).
    n_chains = 2 if (batch_block >= 16 and batch_block % 16 == 0) else 1

    gx_bytes = jnp.dtype(gx_dtype).itemsize
    whh_bytes = jnp.dtype(recurrent_mxu_dtype).itemsize

    # --- fused timesteps per grid step: largest divisor of T whose gate /
    # output slabs are lane-aligned and whose double-buffered pipeline
    # footprint fits a conservative VMEM budget (valid on v5e/v6e/v7x).
    VMEM_PIPELINE_BUDGET = 20 << 20

    def _pipeline_bytes(ct):
        return (2 * batch_block * ct * H4 * gx_bytes      # gx, double-buffered
                + 2 * batch_block * ct * H * 4)           # h1, double-buffered

    if chunk is None:
        chunk = 1
        for ct in sorted((c for c in range(1, T + 1) if T % c == 0),
                         reverse=True):
            ok_align = (ct == T) or ((ct * H4) % 128 == 0 and
                                     (ct * H) % 128 == 0)
            if ok_align and _pipeline_bytes(ct) <= VMEM_PIPELINE_BUDGET:
                chunk = ct
                break
    assert T % chunk == 0, "chunk must divide T"
    assert chunk == T or ((chunk * H4) % 128 == 0 and (chunk * H) % 128 == 0)
    n_c = T // chunk

    needed = (_pipeline_bytes(chunk)
              + H * H4 * whh_bytes              # W_hh^T scratch (single copy)
              + 2 * batch_block * H * 4)        # h/c state scratch
    # Raise the scoped-VMEM limit (v5e default is only 16 MiB) while staying
    # well under v7x's 64 MiB physical per-TC VMEM.
    vmem_limit_bytes = min(max(int(needed * 1.5), 32 << 20), 48 << 20)

    kernel = functools.partial(_lstm_chunk_kernel, chunk, n_chains)

    h1_flat = pl.pallas_call(
        kernel,
        out_shape=jax.ShapeDtypeStruct((B, T * H), jnp.float32),
        grid_spec=pltpu.PrefetchScalarGridSpec(
            num_scalar_prefetch=0,
            grid=(n_b, n_c),
            in_specs=[
                # (BB, chunk*4H) gate slab for this (batch block, time chunk)
                pl.BlockSpec((batch_block, chunk * H4), lambda b, c: (b, c)),
                # W_hh^T stays in HBM; DMA'd manually once per batch block.
                pl.BlockSpec(memory_space=pl.ANY),
            ],
            out_specs=pl.BlockSpec((batch_block, chunk * H),
                                   lambda b, c: (b, c)),
            scratch_shapes=[
                pltpu.VMEM((batch_block, H), jnp.float32),       # h state
                pltpu.VMEM((batch_block, H), jnp.float32),       # c state
                pltpu.VMEM((H, H4), recurrent_mxu_dtype),        # W_hh^T copy
                pltpu.SemaphoreType.DMA(()),                     # its DMA sem
            ],
        ),
        compiler_params=pltpu.CompilerParams(
            dimension_semantics=("parallel", "arbitrary"),
            vmem_limit_bytes=vmem_limit_bytes),
    )(gx, whh_t)

    h1 = h1_flat.reshape(B, T, H)          # free metadata reshape
    # h_n of nn.LSTM on a plain (unpacked) tensor equals output[:, -1, :].
    # TODO(synk): packed / variable-length sequences are not modeled.
    h_final = h1[:, -1, :][None]           # (1, B, H)
    return h1, h_final


def init_params(key, orig_d_l, text_hidden):
    """Deterministic PyTorch-style LSTM init: U(-1/sqrt(H), 1/sqrt(H))."""
    H = text_hidden
    k = 1.0 / jnp.sqrt(jnp.float32(H))
    k1, k2, k3, k4 = jax.random.split(key, 4)
    w_ih = jax.random.uniform(k1, (4 * H, orig_d_l), jnp.float32, -k, k)
    w_hh = jax.random.uniform(k2, (4 * H, H), jnp.float32, -k, k)
    b_ih = jax.random.uniform(k3, (4 * H,), jnp.float32, -k, k)
    b_hh = jax.random.uniform(k4, (4 * H,), jnp.float32, -k, k)
    return w_ih, w_hh, b_ih, b_hh


def _reference_lstm(sequence, params):
    """Pure-JAX reference (lax.scan), PyTorch gate order (i, f, g, o)."""
    w_ih, w_hh, b_ih, b_hh = params
    H = w_hh.shape[1]
    x_tm = jnp.transpose(sequence, (1, 0, 2)).astype(jnp.float32)

    def step(carry, x_t):
        h, c = carry
        gates = x_t @ w_ih.T + h @ w_hh.T + b_ih + b_hh
        i = jax.nn.sigmoid(gates[:, 0 * H:1 * H])
        f = jax.nn.sigmoid(gates[:, 1 * H:2 * H])
        g = jnp.tanh(gates[:, 2 * H:3 * H])
        o = jax.nn.sigmoid(gates[:, 3 * H:4 * H])
        c = f * c + i * g
        h = o * jnp.tanh(c)
        return (h, c), h

    B = sequence.shape[0]
    h0 = jnp.zeros((B, H), jnp.float32)
    (h_f, _), hs = jax.lax.scan(step, (h0, h0), x_tm)
    return jnp.transpose(hs, (1, 0, 2)), h_f[None]


if __name__ == "__main__":
    # Small shapes consistent with the module: batch=2, seq=16,
    # orig_d_l=4 (input feature dim), text_hidden=32.
    B, T, D, H = 2, 16, 4, 32

    key = jax.random.PRNGKey(0)
    k_param, k_x = jax.random.split(key)
    params = init_params(k_param, D, H)
    sequence = jax.random.normal(k_x, (B, T, D), jnp.float32)

    h1_ref, h_final_ref = _reference_lstm(sequence, params)

    # (a) Strict f32 path, chunk=8 -> grid (1, 2): exercises h/c state carry
    #     across grid steps and the manual W_hh DMA.
    h1, h_final = text_subnet_forward(sequence, params, chunk=8,
                                      gx_dtype=jnp.float32,
                                      recurrent_mxu_dtype=jnp.float32)
    jax.block_until_ready((h1, h_final))
    assert h1.shape == (B, T, H) and h_final.shape == (1, B, H)
    assert jnp.allclose(h1, h1_ref, atol=1e-4, rtol=1e-4)
    assert jnp.allclose(h_final, h_final_ref, atol=1e-4, rtol=1e-4)

    # (b) Default performance config: bf16 gx stream + bf16 W_hh on the MXU
    #     (f32 accumulation), auto chunk selection.
    h1b, h_finalb = text_subnet_forward(sequence, params)
    jax.block_until_ready((h1b, h_finalb))
    assert jnp.allclose(h1b, h1_ref, atol=3e-2, rtol=3e-2)
    assert jnp.allclose(h_finalb, h_final_ref, atol=3e-2, rtol=3e-2)

    # (c) Larger batch: auto batch_block=16 -> 2 batch blocks (megacore-
    #     shardable "parallel" axis), 2 interleaved recurrent chains per
    #     block, chunk=8 -> state carry across time chunks.
    B2 = 32
    seq2 = jax.random.normal(jax.random.PRNGKey(1), (B2, T, D), jnp.float32)
    h1_ref2, h_final_ref2 = _reference_lstm(seq2, params)
    h1c, h_finalc = text_subnet_forward(seq2, params, chunk=8)
    jax.block_until_ready((h1c, h_finalc))
    assert h1c.shape == (B2, T, H) and h_finalc.shape == (1, B2, H)
    assert jnp.allclose(h1c, h1_ref2, atol=3e-2, rtol=3e-2)
    assert jnp.allclose(h_finalc, h_final_ref2, atol=3e-2, rtol=3e-2)

    print("KERNEL_OK")
</pallas_src>

<mosaic_0001>
module attributes {stable_mosaic.version = 11 : i64} {
  func.func @_lstm_chunk_kernel(%arg0: i32, %arg1: i32, %arg2: memref<2x1024xf32, #tpu.memory_space<vmem>>, %arg3: memref<32x128xf32, #tpu.memory_space<any>>, %arg4: memref<2x256xf32, #tpu.memory_space<vmem>>, %arg5: memref<2x32xf32, #tpu.memory_space<vmem>>, %arg6: memref<2x32xf32, #tpu.memory_space<vmem>>, %arg7: memref<32x128xf32, #tpu.memory_space<vmem>>, %arg8: memref<!tpu.dma_semaphore, #tpu.memory_space<semaphore_mem>>) attributes {dimension_semantics = [#tpu.dimension_semantics<parallel>, #tpu.dimension_semantics<arbitrary>], iteration_bounds = array<i64: 1, 2>, scalar_prefetch = 0 : i64, scratch_operands = 4 : i64, tpu.core_type = #tpu.core_type<tc>, window_params = [{transform_indices = @transform_0, window_bounds = array<i64: 2, 1024>}, {}, {transform_indices = @transform_2, window_bounds = array<i64: 2, 256>}]} {
    %c0_i32 = arith.constant 0 : i32
    %0 = arith.cmpi eq, %arg1, %c0_i32 : i32
    %1 = arith.extui %0 : i1 to i32
    %c0_i32_0 = arith.constant 0 : i32
    %2 = arith.cmpi ne, %1, %c0_i32_0 : i32
    scf.if %2 {
      %cst_44 = arith.constant 0.000000e+00 : f32
      %168 = vector.broadcast %cst_44 : f32 to vector<2x32xf32>
      %c0_45 = arith.constant 0 : index
      %c0_46 = arith.constant 0 : index
      %169 = vector.load %arg5[%c0_45, %c0_46] : memref<2x32xf32, #tpu.memory_space<vmem>>, vector<2x32xf32>
      tpu.vector_store %arg5[%c0_45, %c0_46], %168 {strides = array<i32>} : memref<2x32xf32, #tpu.memory_space<vmem>>, vector<2x32xf32>,
      %cst_47 = arith.constant 0.000000e+00 : f32
      %170 = vector.broadcast %cst_47 : f32 to vector<2x32xf32>
      %c0_48 = arith.constant 0 : index
      %c0_49 = arith.constant 0 : index
      %171 = vector.load %arg6[%c0_48, %c0_49] : memref<2x32xf32, #tpu.memory_space<vmem>>, vector<2x32xf32>
      tpu.vector_store %arg6[%c0_48, %c0_49], %170 {strides = array<i32>} : memref<2x32xf32, #tpu.memory_space<vmem>>, vector<2x32xf32>,
      tpu.enqueue_dma source(%arg3 : memref<32x128xf32, #tpu.memory_space<any>>) target(%arg7 : memref<32x128xf32, #tpu.memory_space<vmem>>) target_semaphore(%arg8 : memref<!tpu.dma_semaphore, #tpu.memory_space<semaphore_mem>>)
      tpu.wait_dma2 semaphore(%arg8 : memref<!tpu.dma_semaphore, #tpu.memory_space<semaphore_mem>>) src(%arg3 : memref<32x128xf32, #tpu.memory_space<any>>) dst(%arg7 : memref<32x128xf32, #tpu.memory_space<vmem>>)
    } else {
    }
    %c0 = arith.constant 0 : index
    %c0_1 = arith.constant 0 : index
    %3 = vector.load %arg7[%c0, %c0_1] : memref<32x128xf32, #tpu.memory_space<vmem>>, vector<32x128xf32>
    %c0_2 = arith.constant 0 : index
    %c0_3 = arith.constant 0 : index
    %4 = vector.load %arg5[%c0_2, %c0_3] : memref<2x32xf32, #tpu.memory_space<vmem>>, vector<2x32xf32>
    %c0_4 = arith.constant 0 : index
    %c0_5 = arith.constant 0 : index
    %5 = vector.load %arg6[%c0_4, %c0_5] : memref<2x32xf32, #tpu.memory_space<vmem>>, vector<2x32xf32>
    %c0_6 = arith.constant 0 : index
    %c0_7 = arith.constant 0 : index
    %6 = vector.load %arg2[%c0_6, %c0_7] : memref<2x1024xf32, #tpu.memory_space<vmem>>, vector<2x128xf32>
    %cst = arith.constant dense<0.000000e+00> : vector<2x128xf32>
    %7 = tpu.matmul %4, %3, %cst {dimension_numbers = #tpu.dot_dimension_numbers<[1], [0], [0], [1], [0, 0, 1, 1], [], []>} : vector<2x32xf32>, vector<32x128xf32>, vector<2x128xf32> -> vector<2x128xf32>
    %8 = arith.addf %6, %7 : vector<2x128xf32>
    %9 = vector.extract_strided_slice %8 {offsets = [0, 0], sizes = [2, 96], strides = [1, 1]} : vector<2x128xf32> to vector<2x96xf32>
    %10 = arith.negf %9 : vector<2x96xf32>
    %11 = math.exp %10 : vector<2x96xf32>
    %cst_8 = arith.constant 1.000000e+00 : f32
    %12 = vector.broadcast %cst_8 : f32 to vector<2x96xf32>
    %13 = arith.addf %12, %11 : vector<2x96xf32>
    %14 = arith.divf %12, %13 : vector<2x96xf32>
    %15 = vector.extract_strided_slice %8 {offsets = [0, 96], sizes = [2, 32], strides = [1, 1]} : vector<2x128xf32> to vector<2x32xf32>
    %16 = math.tanh %15 : vector<2x32xf32>
    %17 = vector.extract_strided_slice %14 {offsets = [0, 0], sizes = [2, 32], strides = [1, 1]} : vector<2x96xf32> to vector<2x32xf32>
    %18 = vector.extract_strided_slice %14 {offsets = [0, 32], sizes = [2, 32], strides = [1, 1]} : vector<2x96xf32> to vector<2x32xf32>
    %19 = vector.extract_strided_slice %14 {offsets = [0, 64], sizes = [2, 32], strides = [1, 1]} : vector<2x96xf32> to vector<2x32xf32>
    %20 = arith.mulf %18, %5 : vector<2x32xf32>
    %21 = arith.mulf %17, %16 : vector<2x32xf32>
    %22 = arith.addf %20, %21 : vector<2x32xf32>
    %23 = math.tanh %22 : vector<2x32xf32>
    %24 = arith.mulf %19, %23 : vector<2x32xf32>
    %c0_9 = arith.constant 0 : index
    %c0_10 = arith.constant 0 : index
    %25 = vector.load %arg4[%c0_9, %c0_10] : memref<2x256xf32, #tpu.memory_space<vmem>>, vector<2x32xf32>
    tpu.vector_store %arg4[%c0_9, %c0_10], %24 {strides = array<i32>} : memref<2x256xf32, #tpu.memory_space<vmem>>, vector<2x32xf32>,
    %c0_11 = arith.constant 0 : index
    %c128 = arith.constant 128 : index
    %26 = vector.load %arg2[%c0_11, %c128] : memref<2x1024xf32, #tpu.memory_space<vmem>>, vector<2x128xf32>
    %cst_12 = arith.constant dense<0.000000e+00> : vector<2x128xf32>
    %27 = tpu.matmul %24, %3, %cst_12 {dimension_numbers = #tpu.dot_dimension_numbers<[1], [0], [0], [1], [0, 0, 1, 1], [], []>} : vector<2x32xf32>, vector<32x128xf32>, vector<2x128xf32> -> vector<2x128xf32>
    %28 = arith.addf %26, %27 : vector<2x128xf32>
    %29 = vector.extract_strided_slice %28 {offsets = [0, 0], sizes = [2, 96], strides = [1, 1]} : vector<2x128xf32> to vector<2x96xf32>
    %30 = arith.negf %29 : vector<2x96xf32>
    %31 = math.exp %30 : vector<2x96xf32>
    %cst_13 = arith.constant 1.000000e+00 : f32
    %32 = vector.broadcast %cst_13 : f32 to vector<2x96xf32>
    %33 = arith.addf %32, %31 : vector<2x96xf32>
    %34 = arith.divf %32, %33 : vector<2x96xf32>
    %35 = vector.extract_strided_slice %28 {offsets = [0, 96], sizes = [2, 32], strides = [1, 1]} : vector<2x128xf32> to vector<2x32xf32>
    %36 = math.tanh %35 : vector<2x32xf32>
    %37 = vector.extract_strided_slice %34 {offsets = [0, 0], sizes = [2, 32], strides = [1, 1]} : vector<2x96xf32> to vector<2x32xf32>
    %38 = vector.extract_strided_slice %34 {offsets = [0, 32], sizes = [2, 32], strides = [1, 1]} : vector<2x96xf32> to vector<2x32xf32>
    %39 = vector.extract_strided_slice %34 {offsets = [0, 64], sizes = [2, 32], strides = [1, 1]} : vector<2x96xf32> to vector<2x32xf32>
    %40 = arith.mulf %38, %22 : vector<2x32xf32>
    %41 = arith.mulf %37, %36 : vector<2x32xf32>
    %42 = arith.addf %40, %41 : vector<2x32xf32>
    %43 = math.tanh %42 : vector<2x32xf32>
    %44 = arith.mulf %39, %43 : vector<2x32xf32>
    %c0_14 = arith.constant 0 : index
    %c32 = arith.constant 32 : index
    %45 = vector.load %arg4[%c0_14, %c32] : memref<2x256xf32, #tpu.memory_space<vmem>>, vector<2x32xf32>
    tpu.vector_store %arg4[%c0_14, %c32], %44 {strides = array<i32>} : memref<2x256xf32, #tpu.memory_space<vmem>>, vector<2x32xf32>,
    %c0_15 = arith.constant 0 : index
    %c256 = arith.constant 256 : index
    %46 = vector.load %arg2[%c0_15, %c256] : memref<2x1024xf32, #tpu.memory_space<vmem>>, vector<2x128xf32>
    %cst_16 = arith.constant dense<0.000000e+00> : vector<2x128xf32>
    %47 = tpu.matmul %44, %3, %cst_16 {dimension_numbers = #tpu.dot_dimension_numbers<[1], [0], [0], [1], [0, 0, 1, 1], [], []>} : vector<2x32xf32>, vector<32x128xf32>, vector<2x128xf32> -> vector<2x128xf32>
    %48 = arith.addf %46, %47 : vector<2x128xf32>
    %49 = vector.extract_strided_slice %48 {offsets = [0, 0], sizes = [2, 96], strides = [1, 1]} : vector<2x128xf32> to vector<2x96xf32>
    %50 = arith.negf %49 : vector<2x96xf32>
    %51 = math.exp %50 : vector<2x96xf32>
    %cst_17 = arith.constant 1.000000e+00 : f32
    %52 = vector.broadcast %cst_17 : f32 to vector<2x96xf32>
    %53 = arith.addf %52, %51 : vector<2x96xf32>
    %54 = arith.divf %52, %53 : vector<2x96xf32>
    %55 = vector.extract_strided_slice %48 {offsets = [0, 96], sizes = [2, 32], strides = [1, 1]} : vector<2x128xf32> to vector<2x32xf32>
    %56 = math.tanh %55 : vector<2x32xf32>
    %57 = vector.extract_strided_slice %54 {offsets = [0, 0], sizes = [2, 32], strides = [1, 1]} : vector<2x96xf32> to vector<2x32xf32>
    %58 = vector.extract_strided_slice %54 {offsets = [0, 32], sizes = [2, 32], strides = [1, 1]} : vector<2x96xf32> to vector<2x32xf32>
    %59 = vector.extract_strided_slice %54 {offsets = [0, 64], sizes = [2, 32], strides = [1, 1]} : vector<2x96xf32> to vector<2x32xf32>
    %60 = arith.mulf %58, %42 : vector<2x32xf32>
    %61 = arith.mulf %57, %56 : vector<2x32xf32>
    %62 = arith.addf %60, %61 : vector<2x32xf32>
    %63 = math.tanh %62 : vector<2x32xf32>
    %64 = arith.mulf %59, %63 : vector<2x32xf32>
    %c0_18 = arith.constant 0 : index
    %c64 = arith.constant 64 : index
    %65 = vector.load %arg4[%c0_18, %c64] : memref<2x256xf32, #tpu.memory_space<vmem>>, vector<2x32xf32>
    tpu.vector_store %arg4[%c0_18, %c64], %64 {strides = array<i32>} : memref<2x256xf32, #tpu.memory_space<vmem>>, vector<2x32xf32>,
    %c0_19 = arith.constant 0 : index
    %c384 = arith.constant 384 : index
    %66 = vector.load %arg2[%c0_19, %c384] : memref<2x1024xf32, #tpu.memory_space<vmem>>, vector<2x128xf32>
    %cst_20 = arith.constant dense<0.000000e+00> : vector<2x128xf32>
    %67 = tpu.matmul %64, %3, %cst_20 {dimension_numbers = #tpu.dot_dimension_numbers<[1], [0], [0], [1], [0, 0, 1, 1], [], []>} : vector<2x32xf32>, vector<32x128xf32>, vector<2x128xf32> -> vector<2x128xf32>
    %68 = arith.addf %66, %67 : vector<2x128xf32>
    %69 = vector.extract_strided_slice %68 {offsets = [0, 0], sizes = [2, 96], strides = [1, 1]} : vector<2x128xf32> to vector<2x96xf32>
    %70 = arith.negf %69 : vector<2x96xf32>
    %71 = math.exp %70 : vector<2x96xf32>
    %cst_21 = arith.constant 1.000000e+00 : f32
    %72 = vector.broadcast %cst_21 : f32 to vector<2x96xf32>
    %73 = arith.addf %72, %71 : vector<2x96xf32>
    %74 = arith.divf %72, %73 : vector<2x96xf32>
    %75 = vector.extract_strided_slice %68 {offsets = [0, 96], sizes = [2, 32], strides = [1, 1]} : vector<2x128xf32> to vector<2x32xf32>
    %76 = math.tanh %75 : vector<2x32xf32>
    %77 = vector.extract_strided_slice %74 {offsets = [0, 0], sizes = [2, 32], strides = [1, 1]} : vector<2x96xf32> to vector<2x32xf32>
    %78 = vector.extract_strided_slice %74 {offsets = [0, 32], sizes = [2, 32], strides = [1, 1]} : vector<2x96xf32> to vector<2x32xf32>
    %79 = vector.extract_strided_slice %74 {offsets = [0, 64], sizes = [2, 32], strides = [1, 1]} : vector<2x96xf32> to vector<2x32xf32>
    %80 = arith.mulf %78, %62 : vector<2x32xf32>
    %81 = arith.mulf %77, %76 : vector<2x32xf32>
    %82 = arith.addf %80, %81 : vector<2x32xf32>
    %83 = math.tanh %82 : vector<2x32xf32>
    %84 = arith.mulf %79, %83 : vector<2x32xf32>
    %c0_22 = arith.constant 0 : index
    %c96 = arith.constant 96 : index
    %85 = vector.load %arg4[%c0_22, %c96] : memref<2x256xf32, #tpu.memory_space<vmem>>, vector<2x32xf32>
    tpu.vector_store %arg4[%c0_22, %c96], %84 {strides = array<i32>} : memref<2x256xf32, #tpu.memory_space<vmem>>, vector<2x32xf32>,
    %c0_23 = arith.constant 0 : index
    %c512 = arith.constant 512 : index
    %86 = vector.load %arg2[%c0_23, %c512] : memref<2x1024xf32, #tpu.memory_space<vmem>>, vector<2x128xf32>
    %cst_24 = arith.constant dense<0.000000e+00> : vector<2x128xf32>
    %87 = tpu.matmul %84, %3, %cst_24 {dimension_numbers = #tpu.dot_dimension_numbers<[1], [0], [0], [1], [0, 0, 1, 1], [], []>} : vector<2x32xf32>, vector<32x128xf32>, vector<2x128xf32> -> vector<2x128xf32>
    %88 = arith.addf %86, %87 : vector<2x128xf32>
    %89 = vector.extract_strided_slice %88 {offsets = [0, 0], sizes = [2, 96], strides = [1, 1]} : vector<2x128xf32> to vector<2x96xf32>
    %90 = arith.negf %89 : vector<2x96xf32>
    %91 = math.exp %90 : vector<2x96xf32>
    %cst_25 = arith.constant 1.000000e+00 : f32
    %92 = vector.broadcast %cst_25 : f32 to vector<2x96xf32>
    %93 = arith.addf %92, %91 : vector<2x96xf32>
    %94 = arith.divf %92, %93 : vector<2x96xf32>
    %95 = vector.extract_strided_slice %88 {offsets = [0, 96], sizes = [2, 32], strides = [1, 1]} : vector<2x128xf32> to vector<2x32xf32>
    %96 = math.tanh %95 : vector<2x32xf32>
    %97 = vector.extract_strided_slice %94 {offsets = [0, 0], sizes = [2, 32], strides = [1, 1]} : vector<2x96xf32> to vector<2x32xf32>
    %98 = vector.extract_strided_slice %94 {offsets = [0, 32], sizes = [2, 32], strides = [1, 1]} : vector<2x96xf32> to vector<2x32xf32>
    %99 = vector.extract_strided_slice %94 {offsets = [0, 64], sizes = [2, 32], strides = [1, 1]} : vector<2x96xf32> to vector<2x32xf32>
    %100 = arith.mulf %98, %82 : vector<2x32xf32>
    %101 = arith.mulf %97, %96 : vector<2x32xf32>
    %102 = arith.addf %100, %101 : vector<2x32xf32>
    %103 = math.tanh %102 : vector<2x32xf32>
    %104 = arith.mulf %99, %103 : vector<2x32xf32>
    %c0_26 = arith.constant 0 : index
    %c128_27 = arith.constant 128 : index
    %105 = vector.load %arg4[%c0_26, %c128_27] : memref<2x256xf32, #tpu.memory_space<vmem>>, vector<2x32xf32>
    tpu.vector_store %arg4[%c0_26, %c128_27], %104 {strides = array<i32>} : memref<2x256xf32, #tpu.memory_space<vmem>>, vector<2x32xf32>,
    %c0_28 = arith.constant 0 : index
    %c640 = arith.constant 640 : index
    %106 = vector.load %arg2[%c0_28, %c640] : memref<2x1024xf32, #tpu.memory_space<vmem>>, vector<2x128xf32>
    %cst_29 = arith.constant dense<0.000000e+00> : vector<2x128xf32>
    %107 = tpu.matmul %104, %3, %cst_29 {dimension_numbers = #tpu.dot_dimension_numbers<[1], [0], [0], [1], [0, 0, 1, 1], [], []>} : vector<2x32xf32>, vector<32x128xf32>, vector<2x128xf32> -> vector<2x128xf32>
    %108 = arith.addf %106, %107 : vector<2x128xf32>
    %109 = vector.extract_strided_slice %108 {offsets = [0, 0], sizes = [2, 96], strides = [1, 1]} : vector<2x128xf32> to vector<2x96xf32>
    %110 = arith.negf %109 : vector<2x96xf32>
    %111 = math.exp %110 : vector<2x96xf32>
    %cst_30 = arith.constant 1.000000e+00 : f32
    %112 = vector.broadcast %cst_30 : f32 to vector<2x96xf32>
    %113 = arith.addf %112, %111 : vector<2x96xf32>
    %114 = arith.divf %112, %113 : vector<2x96xf32>
    %115 = vector.extract_strided_slice %108 {offsets = [0, 96], sizes = [2, 32], strides = [1, 1]} : vector<2x128xf32> to vector<2x32xf32>
    %116 = math.tanh %115 : vector<2x32xf32>
    %117 = vector.extract_strided_slice %114 {offsets = [0, 0], sizes = [2, 32], strides = [1, 1]} : vector<2x96xf32> to vector<2x32xf32>
    %118 = vector.extract_strided_slice %114 {offsets = [0, 32], sizes = [2, 32], strides = [1, 1]} : vector<2x96xf32> to vector<2x32xf32>
    %119 = vector.extract_strided_slice %114 {offsets = [0, 64], sizes = [2, 32], strides = [1, 1]} : vector<2x96xf32> to vector<2x32xf32>
    %120 = arith.mulf %118, %102 : vector<2x32xf32>
    %121 = arith.mulf %117, %116 : vector<2x32xf32>
    %122 = arith.addf %120, %121 : vector<2x32xf32>
    %123 = math.tanh %122 : vector<2x32xf32>
    %124 = arith.mulf %119, %123 : vector<2x32xf32>
    %c0_31 = arith.constant 0 : index
    %c160 = arith.constant 160 : index
    %125 = vector.load %arg4[%c0_31, %c160] : memref<2x256xf32, #tpu.memory_space<vmem>>, vector<2x32xf32>
    tpu.vector_store %arg4[%c0_31, %c160], %124 {strides = array<i32>} : memref<2x256xf32, #tpu.memory_space<vmem>>, vector<2x32xf32>,
    %c0_32 = arith.constant 0 : index
    %c768 = arith.constant 768 : index
    %126 = vector.load %arg2[%c0_32, %c768] : memref<2x1024xf32, #tpu.memory_space<vmem>>, vector<2x128xf32>
    %cst_33 = arith.constant dense<0.000000e+00> : vector<2x128xf32>
    %127 = tpu.matmul %124, %3, %cst_33 {dimension_numbers = #tpu.dot_dimension_numbers<[1], [0], [0], [1], [0, 0, 1, 1], [], []>} : vector<2x32xf32>, vector<32x128xf32>, vector<2x128xf32> -> vector<2x128xf32>
    %128 = arith.addf %126, %127 : vector<2x128xf32>
    %129 = vector.extract_strided_slice %128 {offsets = [0, 0], sizes = [2, 96], strides = [1, 1]} : vector<2x128xf32> to vector<2x96xf32>
    %130 = arith.negf %129 : vector<2x96xf32>
    %131 = math.exp %130 : vector<2x96xf32>
    %cst_34 = arith.constant 1.000000e+00 : f32
    %132 = vector.broadcast %cst_34 : f32 to vector<2x96xf32>
    %133 = arith.addf %132, %131 : vector<2x96xf32>
    %134 = arith.divf %132, %133 : vector<2x96xf32>
    %135 = vector.extract_strided_slice %128 {offsets = [0, 96], sizes = [2, 32], strides = [1, 1]} : vector<2x128xf32> to vector<2x32xf32>
    %136 = math.tanh %135 : vector<2x32xf32>
    %137 = vector.extract_strided_slice %134 {offsets = [0, 0], sizes = [2, 32], strides = [1, 1]} : vector<2x96xf32> to vector<2x32xf32>
    %138 = vector.extract_strided_slice %134 {offsets = [0, 32], sizes = [2, 32], strides = [1, 1]} : vector<2x96xf32> to vector<2x32xf32>
    %139 = vector.extract_strided_slice %134 {offsets = [0, 64], sizes = [2, 32], strides = [1, 1]} : vector<2x96xf32> to vector<2x32xf32>
    %140 = arith.mulf %138, %122 : vector<2x32xf32>
    %141 = arith.mulf %137, %136 : vector<2x32xf32>
    %142 = arith.addf %140, %141 : vector<2x32xf32>
    %143 = math.tanh %142 : vector<2x32xf32>
    %144 = arith.mulf %139, %143 : vector<2x32xf32>
    %c0_35 = arith.constant 0 : index
    %c192 = arith.constant 192 : index
    %145 = vector.load %arg4[%c0_35, %c192] : memref<2x256xf32, #tpu.memory_space<vmem>>, vector<2x32xf32>
    tpu.vector_store %arg4[%c0_35, %c192], %144 {strides = array<i32>} : memref<2x256xf32, #tpu.memory_space<vmem>>, vector<2x32xf32>,
    %c0_36 = arith.constant 0 : index
    %c896 = arith.constant 896 : index
    %146 = vector.load %arg2[%c0_36, %c896] : memref<2x1024xf32, #tpu.memory_space<vmem>>, vector<2x128xf32>
    %cst_37 = arith.constant dense<0.000000e+00> : vector<2x128xf32>
    %147 = tpu.matmul %144, %3, %cst_37 {dimension_numbers = #tpu.dot_dimension_numbers<[1], [0], [0], [1], [0, 0, 1, 1], [], []>} : vector<2x32xf32>, vector<32x128xf32>, vector<2x128xf32> -> vector<2x128xf32>
    %148 = arith.addf %146, %147 : vector<2x128xf32>
    %149 = vector.extract_strided_slice %148 {offsets = [0, 0], sizes = [2, 96], strides = [1, 1]} : vector<2x128xf32> to vector<2x96xf32>
    %150 = arith.negf %149 : vector<2x96xf32>
    %151 = math.exp %150 : vector<2x96xf32>
    %cst_38 = arith.constant 1.000000e+00 : f32
    %152 = vector.broadcast %cst_38 : f32 to vector<2x96xf32>
    %153 = arith.addf %152, %151 : vector<2x96xf32>
    %154 = arith.divf %152, %153 : vector<2x96xf32>
    %155 = vector.extract_strided_slice %148 {offsets = [0, 96], sizes = [2, 32], strides = [1, 1]} : vector<2x128xf32> to vector<2x32xf32>
    %156 = math.tanh %155 : vector<2x32xf32>
    %157 = vector.extract_strided_slice %154 {offsets = [0, 0], sizes = [2, 32], strides = [1, 1]} : vector<2x96xf32> to vector<2x32xf32>
    %158 = vector.extract_strided_slice %154 {offsets = [0, 32], sizes = [2, 32], strides = [1, 1]} : vector<2x96xf32> to vector<2x32xf32>
    %159 = vector.extract_strided_slice %154 {offsets = [0, 64], sizes = [2, 32], strides = [1, 1]} : vector<2x96xf32> to vector<2x32xf32>
    %160 = arith.mulf %158, %142 : vector<2x32xf32>
    %161 = arith.mulf %157, %156 : vector<2x32xf32>
    %162 = arith.addf %160, %161 : vector<2x32xf32>
    %163 = math.tanh %162 : vector<2x32xf32>
    %164 = arith.mulf %159, %163 : vector<2x32xf32>
    %c0_39 = arith.constant 0 : index
    %c224 = arith.constant 224 : index
    %165 = vector.load %arg4[%c0_39, %c224] : memref<2x256xf32, #tpu.memory_space<vmem>>, vector<2x32xf32>
    tpu.vector_store %arg4[%c0_39, %c224], %164 {strides = array<i32>} : memref<2x256xf32, #tpu.memory_space<vmem>>, vector<2x32xf32>,
    %c0_40 = arith.constant 0 : index
    %c0_41 = arith.constant 0 : index
    %166 = vector.load %arg5[%c0_40, %c0_41] : memref<2x32xf32, #tpu.memory_space<vmem>>, vector<2x32xf32>
    tpu.vector_store %arg5[%c0_40, %c0_41], %164 {strides = array<i32>} : memref<2x32xf32, #tpu.memory_space<vmem>>, vector<2x32xf32>,
    %c0_42 = arith.constant 0 : index
    %c0_43 = arith.constant 0 : index
    %167 = vector.load %arg6[%c0_42, %c0_43] : memref<2x32xf32, #tpu.memory_space<vmem>>, vector<2x32xf32>
    tpu.vector_store %arg6[%c0_42, %c0_43], %162 {strides = array<i32>} : memref<2x32xf32, #tpu.memory_space<vmem>>, vector<2x32xf32>,
    return
  }
  func.func @transform_0(%arg0: i32, %arg1: i32) -> (i32, i32) {
    %c0_i32 = arith.constant 0 : i32
    return %arg0, %arg1 : i32, i32
  }
  func.func @transform_2(%arg0: i32, %arg1: i32) -> (i32, i32) {
    %c0_i32 = arith.constant 0 : i32
    return %arg0, %arg1 : i32, i32
  }
}

</mosaic_0001>

<llo_original>
// kernel: tpu_custom_call.1
$region0: #{tpu_custom_call.1}
  #allocation0 [shape = 'u32[]', space=smem, size = 0x4, offset = 0x4, fixed_abs, tag = 'smem constant byte address 0x4 - core index']
  #allocation1 [shape = 'u32[144,128]{1,0:T(1,128)}', space=vmem, size = 0x12000, scoped, tag = 'internal scratch']
  #allocation2 [shape = 'f32[2,32]{1,0:T(2,128)}', space=vmem, size = 0x400, scoped, tag = 'scratch operand']
  #allocation3 [shape = 'f32[2,32]{1,0:T(2,128)}', space=vmem, size = 0x400, scoped, tag = 'scratch operand']
  #allocation4 [shape = 'f32[32,128]{1,0:T(8,128)}', space=vmem, size = 0x4000, scoped, tag = 'scratch operand']
  #allocation5 [shape = 's32[1]{0}', space=sflag, size = 0x4, scoped, tag = 'scratch operand']
  #allocation10 [shape = 's32[]', space=sflag, size = 0x4, offset = 0, fixed_abs, tag = 'sflag constant byte address 0x0 - dummy sync flag']
  #allocation11 [shape = 's32[]', space=sflag, size = 0x4, offset = 0, fixed_abs, tag = 'sflag constant byte address 0x0 - dummy sync flag']
  #allocation12 [shape = 'u32[]', space=smem, size = 0x4, offset = 0x44, fixed_abs, tag = 'smem constant byte address 0x44 - assertion arg 0']
  #allocation13 [shape = 'u32[]', space=smem, size = 0x4, offset = 0x48, fixed_abs, tag = 'smem constant byte address 0x48 - assertion arg 1']
  %s0 = inlined_call_operand.hbm [shape: f32[2,2048], index: 0, kind: input, shape index: {}]
  %s1 = inlined_call_operand.hbm [shape: f32[32,128], index: 1, kind: input, shape index: {}]
  %s2 = inlined_call_operand.hbm [shape: f32[2,512], index: 2, kind: output, shape index: {}]
  %s3 = sld [smem:[#allocation0]]
  $region49: #{tpu_custom_call.1} parent=0
    _
  %s5 = ssub.s32 1, %s3
  %s6 = scalar_select 0, %s5, %s3
  $region1: #{tpu_custom_call.1} parent=0
    #allocation6 [shape = 'u8[16384]{0}', space=vmem, size = 0x4000, scoped, tag = 'input window, operand 0']
    #allocation7 [shape = 's32[2]{0}', space=sflag, size = 0x8, scoped, tag = 'scoped memory for tpu_custom_call.1']
    #allocation8 [shape = 's32[2]{0}', space=sflag, size = 0x8, scoped, tag = 'scoped memory for tpu_custom_call.1']
    #allocation9 [shape = 'u8[4096]{0}', space=vmem, size = 0x1000, scoped, tag = 'output window, operand 0']
    %7 = vsyncpa [#allocation7], 0
    %s8 = scalar_lea.sflag [#allocation7], 1
    %9 = vsyncpa %s8, 0
    %10 = vsyncpa [#allocation8], 0
    %s11 = scalar_lea.sflag [#allocation8], 1
    %12 = vsyncpa %s11, 0
    loop: start=0, step=1, limit=4
    $region2: #{tpu_custom_call.1} parent=1 // loop_pre_header
      _
    $region3: #{tpu_custom_call.1} parent=1 // loop_header
      %s14 = sphi 0, %s18
      %p15 = scmp.ge.s32.totalorder %s14, 4
      %s21 = sphi 0, %s33
      %s22 = sphi 0, %s29
      %s23 = sphi 0, %s21
      %s24 = sphi 0, %s22
      %s25 = sphi 0, %s23
      %s26 = sphi 0, %s24
      %s38 = sphi 0, %s40
      %s41 = sphi 0, %s38
      %s42 = sphi 0, %s41
      %s58 = sphi 0, %s42
      %s66 = sphi 0, %s68
      %s69 = sphi 0, %s66
      %s70 = sphi 0, %s69
      %s86 = sphi 0, %s70
    $region4: #{tpu_custom_call.1} parent=1 // loop_header_branch
      %17 = sbr.rel (%p15) target = $region8
    $region5: #{tpu_custom_call.1} parent=1 // loop_body
      %s19 = ssub.s32 %s14, 1
      %s20 = ssub.s32 %s14, 2
      %s27 = sadd.s32 1, %s22
      %p28 = scmp.ge.s32.totalorder %s27, 2
      %s29 = scalar_select %p28, 0, %s27
      %s30 = sadd.s32 1, %s21
      %s31 = scalar_select %p28, %s30, %s21
      %p32 = scmp.ge.s32.totalorder %s31, 1
      %s33 = scalar_select %p32, 0, %s31
      %s34 = ssub.s32 %s21, %s33
      %s35 = ssub.s32 %s22, %s29
      %s36 = sor.u32 %s34, %s35
      %p37 = scmp.eq.s32.totalorder %s36, 0
      %s39 = sadd.s32 %s38, 1
      %s40 = scalar_select %p37, %s38, %s39
      %p43 = pneg %p37
      %p44 = scmp.eq.s32.totalorder %s14, 1
      %p45 = por %p43, %p44
      %p46 = scmp.ne.s32.totalorder %s38, %s41
      %p47 = scmp.eq.s32.totalorder %s14, 0
      %p48 = por %p46, %p47
      %p49 = scmp.ne.s32.totalorder %s38, %s41
      %p50 = scmp.eq.s32.totalorder %s19, 1
      %p51 = por %p49, %p50
      %p52 = scmp.ne.s32.totalorder %s41, %s42
      %p53 = scmp.eq.s32.totalorder %s19, 0
      %p54 = por %p52, %p53
      %p55 = scmp.ne.s32.totalorder %s41, %s42
      %p56 = scmp.eq.s32.totalorder %s20, 1
      %p57 = por %p55, %p56
      %p59 = scmp.ne.s32.totalorder %s42, %s58
      %p60 = scmp.eq.s32.totalorder %s20, 0
      %p61 = por %p59, %p60
      %s62 = ssub.s32 %s21, %s33
      %s63 = ssub.s32 %s22, %s29
      %s64 = sor.u32 %s62, %s63
      %p65 = scmp.eq.s32.totalorder %s64, 0
      %s67 = sadd.s32 %s66, 1
      %s68 = scalar_select %p65, %s66, %s67
      %p71 = pneg %p65
      %p72 = scmp.eq.s32.totalorder %s14, 1
      %p73 = por %p71, %p72
      %p74 = scmp.ne.s32.totalorder %s66, %s69
      %p75 = scmp.eq.s32.totalorder %s14, 0
      %p76 = por %p74, %p75
      %p77 = scmp.ne.s32.totalorder %s66, %s69
      %p78 = scmp.eq.s32.totalorder %s19, 1
      %p79 = por %p77, %p78
      %p80 = scmp.ne.s32.totalorder %s69, %s70
      %p81 = scmp.eq.s32.totalorder %s19, 0
      %p82 = por %p80, %p81
      %p83 = scmp.ne.s32.totalorder %s69, %s70
      %p84 = scmp.eq.s32.totalorder %s20, 1
      %p85 = por %p83, %p84
      %p87 = scmp.ne.s32.totalorder %s70, %s86
      %p88 = scmp.eq.s32.totalorder %s20, 0
      %p89 = por %p87, %p88
      %p90 = scmp.le.s32.totalorder 1, %s14
      %p91 = scmp.lt.s32.totalorder %s14, 3
      %p92 = pnand %p90, %p91
      %p93 = pneg %p92
      // Predicated region
      $region9: #{tpu_custom_call.1} parent=5 // pred_check
        _
      $region10: #{tpu_custom_call.1} parent=5 // pred_check_branch
        %95 = sbr.rel (%p92) target = $region12
      $region11: #{tpu_custom_call.1} parent=5 // pred_region
        %s96 = ssub.s32 %s14, 1
      $region12: #{tpu_custom_call.1} parent=5 // pred_fallthru
        _
      %p97 = scmp.lt.s32.totalorder %s14, 2
      // Predicated region
      $region13: #{tpu_custom_call.1} parent=5 // pred_check
        %p98 = pneg %p97
      $region14: #{tpu_custom_call.1} parent=5 // pred_check_branch
        %100 = sbr.rel (%p98) target = $region16
      $region15: #{tpu_custom_call.1} parent=5 // pred_region
        // Predicated region
        $region17: #{tpu_custom_call.1} parent=15 // pred_check
          %p101 = pneg %p48
        $region18: #{tpu_custom_call.1} parent=15 // pred_check_branch
          %103 = sbr.rel (%p101) target = $region20
        $region19: #{tpu_custom_call.1} parent=15 // pred_region
          %s104 = sand.u32 %s38, 1
          %s105 = scalar_lea.sflag [#allocation7], %s104
          %s106 = sand.u32 %s38, 1
          %s107 = smul.addr %s106, 16
          %s108 = scalar_lea.vmem [#allocation6], %s107
          %s109 = smul.u32 8, %s22
          %s111 = ssub.s32 256, 256
          %112 = vsyncadd %s105, %s111
          %s113 = smul.addr %s21, 16
          %s114 = sadd.s32 %s109, %s113
          %s115 = smul.addr %s114, 32
          %s116 = scalar_lea.hbm %s0, %s115
          %s118 = sshll.u32 %s108, 4
          %s119 = int_to_ptr.vmem [resolvable:$true] %s118
          %121 = dma.hbm_to_vmem [thread:$0]  %s116, 256, %s119, %s105
        $region20: #{tpu_custom_call.1} parent=15 // pred_fallthru
          _
      $region16: #{tpu_custom_call.1} parent=5 // pred_fallthru
        _
      %p122 = scmp.le.s32.totalorder 1, %s14
      %p123 = scmp.lt.s32.totalorder %s14, 3
      %p124 = pnand %p122, %p123
      %p125 = pneg %p124
      // Predicated region
      $region21: #{tpu_custom_call.1} parent=5 // pred_check
        _
      $region22: #{tpu_custom_call.1} parent=5 // pred_check_branch
        %127 = sbr.rel (%p124) target = $region24
      $region23: #{tpu_custom_call.1} parent=5 // pred_region
        %s128 = ssub.s32 %s14, 1
        %s129 = sand.u32 %s41, 1
        %s130 = scalar_lea.sflag [#allocation7], %s129
        %s131 = sand.u32 %s41, 1
        %s132 = smul.addr %s131, 16
        %s133 = scalar_lea.vmem [#allocation6], %s132
        // Predicated region
        $region25: #{tpu_custom_call.1} parent=23 // pred_check
          %p134 = pneg %p54
        $region26: #{tpu_custom_call.1} parent=23 // pred_check_branch
          %136 = sbr.rel (%p134) target = $region28
        $region27: #{tpu_custom_call.1} parent=23 // pred_region
          %137 = dma.done %s130, 256
        $region28: #{tpu_custom_call.1} parent=23 // pred_fallthru
          _
        %s138 = sand.u32 %s41, 1
        %s139 = scalar_lea.sflag [#allocation7], %s138
        %s140 = sand.u32 %s41, 1
        %s141 = smul.addr %s140, 16
        %s142 = scalar_lea.vmem [#allocation6], %s141
        %p143 = pneg %p54
        %p144 = pneg %p51
        %p145 = pneg %p82
        %p146 = pneg %p79
        %s147 = sand.u32 %s69, 1
        %s148 = scalar_lea.sflag [#allocation8], %s147
        %s149 = sand.u32 %s69, 1
        %s150 = smul.addr %s149, 4
        %s151 = scalar_lea.vmem [#allocation9], %s150
        %s152 = smul.u32 8, %s24
        %s153 = smul.u32 2, %s24
        %p154 = scmp.eq.s32.totalorder %s24, 0
        // Predicated region
        $region29: #{tpu_custom_call.1} parent=23 // pred_check
          %p155 = pneg %p154
        $region30: #{tpu_custom_call.1} parent=23 // pred_check_branch
          %157 = sbr.rel (%p155) target = $region32
        $region31: #{tpu_custom_call.1} parent=23 // pred_region
          %vm158 = vcmask 254976
          %159 = vst.msk [vmem:[#allocation2] sm:$0x3] %vm158, 0.0
          %160 = vst.msk [vmem:[#allocation3] sm:$0x3] %vm158, 0.0
          // Predicated region
          $region33: #{tpu_custom_call.1} parent=31 // pred_check
            _
          $region34: #{tpu_custom_call.1} parent=31 // pred_check_branch
            %162 = sbr.rel target = $region36
          $region35: #{tpu_custom_call.1} parent=31 // pred_region
            %163 = sst [smem:[#allocation12]] [#allocation11]
            %164 = sst [smem:[#allocation13]] [#allocation10]
          $region36: #{tpu_custom_call.1} parent=31 // pred_fallthru
            _
          %166 = shalt.err (0)
          %s168 = sshll.u32 [#allocation4], 4
          %s169 = int_to_ptr.vmem [resolvable:$true] %s168
          %171 = dma.hbm_to_vmem [thread:$0]  %s1, 512, %s169, [#allocation5]
          %s172 = smul.u32 32, 1
          %s173 = sshll.u32 %s172, 4
          %174 = dma.done [#allocation5], %s173
        $region32: #{tpu_custom_call.1} parent=23 // pred_fallthru
          _
        %v175 = vld [vmem:[#allocation4] sm:$0xff]
        %v176 = vld [vmem:[#allocation4 + $0x8] sm:$0xff]
        %v177 = vld [vmem:[#allocation4 + $0x10] sm:$0xff]
        %v178 = vld [vmem:[#allocation4 + $0x18] sm:$0xff]
        %v179 = vld [vmem:[#allocation2] sm:$0x3]
        %v180 = vld [vmem:[#allocation3] sm:$0x3]
        %v181 = vld [vmem:[%s133] sm:$0x3]
        %vm182 = vcmask 261120
        %v184 = vsel %vm182, %v179, 0
        %186 = vmatprep.subr.mxu0 0.0
        %187 = vmatpush1.msra.mxu0 0.0
        %188 = vmatprep.subr.mxu0 0.0
        %189 = vmatpush1.msra.mxu0 0.0
        %190 = vmatprep.subr.mxu0 0.0
        %191 = vmatpush1.msra.mxu0 0.0
        %192 = vmatprep.subr.mxu0 0.0
        %193 = vmatpush1.msra.mxu0 0.0
        %194 = vmatprep.subr.mxu0 0.0
        %195 = vmatpush1.msra.mxu0 0.0
        %196 = vmatprep.subr.mxu0 0.0
        %197 = vmatpush1.msra.mxu0 0.0
        %198 = vmatprep.subr.mxu0 0.0
        %199 = vmatpush1.msra.mxu0 0.0
        %200 = vmatprep.subr.mxu0 0.0
        %201 = vmatpush1.msra.mxu0 0.0
        %202 = vmatprep.subr.mxu0 0.0
        %203 = vmatpush1.msra.mxu0 0.0
        %204 = vmatprep.subr.mxu0 0.0
        %205 = vmatpush1.msra.mxu0 0.0
        %206 = vmatprep.subr.mxu0 0.0
        %207 = vmatpush1.msra.mxu0 0.0
        %208 = vmatprep.subr.mxu0 0.0
        %209 = vmatpush1.msra.mxu0 0.0
        %210 = vmatprep.subr.mxu0 0.0
        %211 = vmatpush1.msra.mxu0 %v178
        %212 = vmatprep.subr.mxu0 0.0
        %213 = vmatpush1.msra.mxu0 %v177
        %214 = vmatprep.subr.mxu0 0.0
        %215 = vmatpush1.msra.mxu0 %v176
        %216 = vmatprep.subr.mxu0 0.0
        %217 = vmatpush1.msra.mxu0 %v175
        %218 = vmatprep.subr.mxu0 0.0
        %219 = vmatpush2.msra.mxu0 0.0
        %220 = vmatprep.subr.mxu0 0.0
        %221 = vmatpush2.msra.mxu0 0.0
        %222 = vmatprep.subr.mxu0 0.0
        %223 = vmatpush2.msra.mxu0 0.0
        %224 = vmatprep.subr.mxu0 0.0
        %225 = vmatpush2.msra.mxu0 0.0
        %226 = vmatprep.subr.mxu0 0.0
        %227 = vmatpush2.msra.mxu0 0.0
        %228 = vmatprep.subr.mxu0 0.0
        %229 = vmatpush2.msra.mxu0 0.0
        %230 = vmatprep.subr.mxu0 0.0
        %231 = vmatpush2.msra.mxu0 0.0
        %232 = vmatprep.subr.mxu0 0.0
        %233 = vmatpush2.msra.mxu0 0.0
        %234 = vmatprep.subr.mxu0 0.0
        %235 = vmatpush2.msra.mxu0 0.0
        %236 = vmatprep.subr.mxu0 0.0
        %237 = vmatpush2.msra.mxu0 0.0
        %238 = vmatprep.subr.mxu0 0.0
        %239 = vmatpush2.msra.mxu0 0.0
        %240 = vmatprep.subr.mxu0 0.0
        %241 = vmatpush2.msra.mxu0 0.0
        %242 = vmatprep.subr.mxu0 0.0
        %243 = vmatpush2.msra.mxu0 0.0
        %244 = vmatprep.subr.mxu0 0.0
        %245 = vmatpush2.msra.mxu0 0.0
        %246 = vmatprep.subr.mxu0 0.0
        %247 = vmatpush2.msra.mxu0 0.0
        %248 = vmatprep.subr.mxu0 0.0
        %249 = vmatpush2.msra.mxu0 0.0
        %250 = vmatprep.mubr.f32.mxu0 0.0
        %251 = vmatmul.mubr.f32.gmra.mxu0 %v184
        %v252 = vpop.f32.mrf.mxu0
        %v253 = vadd.f32 0.0, %v252
        %v254 = vpop.f32.mrf.mxu0
        %255 = vdwg.mxu0
        %v256 = vadd.f32 %v181, %v253
        %v257 = vxor.u32 %v256, 2147483648
        %v258 = vmul.f32 %v257, 1.442695
        %v259 = vpow.pop %v258
        %v260 = vadd.f32 %v259, 1.0
        %v261 = vrcp.pop %v260
        %v262 = vmul.f32 1.0, %v261
        %v263 = vtanh.pop %v256
        %v266 = vunpack.c.l.s4 1983009808
        %v267 = vunpack.c.0.s8 %v266
        %v268 = vlaneseq
        %v269 = vshrl.u32 %v268, 7
        %v270 = vsub.s32 %v267, %v269
        %v271 = vrot.slane %v180, %v270
        %272 = vrot.lane.b32.xlu0 %v271, 32
        %v273 = vpop.permute.xlu0 %272
        %v275 = vmul.f32 %v262, %v273
        %277 = vrot.lane.b32.xlu0 %v263, 32
        %v278 = vpop.permute.xlu0 %277
        %v280 = vmul.f32 %v262, %v278
        %282 = vrot.lane.b32.xlu0 %v280, 32
        %v283 = vpop.permute.xlu0 %282
        %v285 = vadd.f32 %v275, %v283
        %v286 = vtanh.pop %v285
        %288 = vrot.lane.b32.xlu0 %v286, 32
        %v289 = vpop.permute.xlu0 %288
        %v291 = vmul.f32 %v262, %v289
        %293 = vrot.lane.b32.xlu0 %v291, 64
        %v294 = vpop.permute.xlu0 %293
        %vm296 = vcmask 254976
        %297 = vst.msk [vmem:[%s151] sm:$0x3] %vm296, %v294
        %v298 = vld [vmem:[%s133 + $0x2] sm:$0x3]
        %v300 = vunpack.c.l.s4 1983009808
        %v301 = vunpack.c.0.s8 %v300
        %v302 = vlaneseq
        %v303 = vshrl.u32 %v302, 7
        %v304 = vsub.s32 %v301, %v303
        %v305 = vrot.slane %v291, %v304
        %306 = vrot.lane.b32.xlu0 %v305, 64
        %v307 = vpop.permute.xlu0 %306
        %v308 = vsel %vm182, %v307, 0
        %310 = vmatprep.subr.mxu0 0.0
        %311 = vmatpush1.msra.mxu0 0.0
        %312 = vmatprep.subr.mxu0 0.0
        %313 = vmatpush1.msra.mxu0 0.0
        %314 = vmatprep.subr.mxu0 0.0
        %315 = vmatpush1.msra.mxu0 0.0
        %316 = vmatprep.subr.mxu0 0.0
        %317 = vmatpush1.msra.mxu0 0.0
        %318 = vmatprep.subr.mxu0 0.0
        %319 = vmatpush1.msra.mxu0 0.0
        %320 = vmatprep.subr.mxu0 0.0
        %321 = vmatpush1.msra.mxu0 0.0
        %322 = vmatprep.subr.mxu0 0.0
        %323 = vmatpush1.msra.mxu0 0.0
        %324 = vmatprep.subr.mxu0 0.0
        %325 = vmatpush1.msra.mxu0 0.0
        %326 = vmatprep.subr.mxu0 0.0
        %327 = vmatpush1.msra.mxu0 0.0
        %328 = vmatprep.subr.mxu0 0.0
        %329 = vmatpush1.msra.mxu0 0.0
        %330 = vmatprep.subr.mxu0 0.0
        %331 = vmatpush1.msra.mxu0 0.0
        %332 = vmatprep.subr.mxu0 0.0
        %333 = vmatpush1.msra.mxu0 0.0
        %334 = vmatprep.subr.mxu0 0.0
        %335 = vmatpush1.msra.mxu0 %v178
        %336 = vmatprep.subr.mxu0 0.0
        %337 = vmatpush1.msra.mxu0 %v177
        %338 = vmatprep.subr.mxu0 0.0
        %339 = vmatpush1.msra.mxu0 %v176
        %340 = vmatprep.subr.mxu0 0.0
        %341 = vmatpush1.msra.mxu0 %v175
        %342 = vmatprep.subr.mxu0 0.0
        %343 = vmatpush2.msra.mxu0 0.0
        %344 = vmatprep.subr.mxu0 0.0
        %345 = vmatpush2.msra.mxu0 0.0
        %346 = vmatprep.subr.mxu0 0.0
        %347 = vmatpush2.msra.mxu0 0.0
        %348 = vmatprep.subr.mxu0 0.0
        %349 = vmatpush2.msra.mxu0 0.0
        %350 = vmatprep.subr.mxu0 0.0
        %351 = vmatpush2.msra.mxu0 0.0
        %352 = vmatprep.subr.mxu0 0.0
        %353 = vmatpush2.msra.mxu0 0.0
        %354 = vmatprep.subr.mxu0 0.0
        %355 = vmatpush2.msra.mxu0 0.0
        %356 = vmatprep.subr.mxu0 0.0
        %357 = vmatpush2.msra.mxu0 0.0
        %358 = vmatprep.subr.mxu0 0.0
        %359 = vmatpush2.msra.mxu0 0.0
        %360 = vmatprep.subr.mxu0 0.0
        %361 = vmatpush2.msra.mxu0 0.0
        %362 = vmatprep.subr.mxu0 0.0
        %363 = vmatpush2.msra.mxu0 0.0
        %364 = vmatprep.subr.mxu0 0.0
        %365 = vmatpush2.msra.mxu0 0.0
        %366 = vmatprep.subr.mxu0 0.0
        %367 = vmatpush2.msra.mxu0 0.0
        %368 = vmatprep.subr.mxu0 0.0
        %369 = vmatpush2.msra.mxu0 0.0
        %370 = vmatprep.subr.mxu0 0.0
        %371 = vmatpush2.msra.mxu0 0.0
        %372 = vmatprep.subr.mxu0 0.0
        %373 = vmatpush2.msra.mxu0 0.0
        %374 = vmatprep.mubr.f32.mxu0 0.0
        %375 = vmatmul.mubr.f32.gmra.mxu0 %v308
        %v376 = vpop.f32.mrf.mxu0
        %v377 = vadd.f32 0.0, %v376
        %v378 = vpop.f32.mrf.mxu0
        %379 = vdwg.mxu0
        %v380 = vadd.f32 %v298, %v377
        %v381 = vxor.u32 %v380, 2147483648
        %v382 = vmul.f32 %v381, 1.442695
        %v383 = vpow.pop %v382
        %v384 = vadd.f32 %v383, 1.0
        %v385 = vrcp.pop %v384
        %v386 = vmul.f32 1.0, %v385
        %v387 = vtanh.pop %v380
        %v388 = vmul.f32 %v386, %v285
        %390 = vrot.lane.b32.xlu0 %v387, 32
        %v391 = vpop.permute.xlu0 %390
        %v393 = vmul.f32 %v386, %v391
        %395 = vrot.lane.b32.xlu0 %v393, 32
        %v396 = vpop.permute.xlu0 %395
        %v398 = vadd.f32 %v388, %v396
        %v399 = vtanh.pop %v398
        %401 = vrot.lane.b32.xlu0 %v399, 32
        %v402 = vpop.permute.xlu0 %401
        %v404 = vmul.f32 %v386, %v402
        %406 = vrot.lane.b32.xlu0 %v404, 96
        %v407 = vpop.permute.xlu0 %406
        %vm409 = vcmask 517376
        %410 = vst.msk [vmem:[%s151] sm:$0x3] %vm409, %v407
        %v411 = vld [vmem:[%s133 + $0x4] sm:$0x3]
        %v413 = vunpack.c.l.s4 1983009808
        %v414 = vunpack.c.0.s8 %v413
        %v415 = vlaneseq
        %v416 = vshrl.u32 %v415, 7
        %v417 = vsub.s32 %v414, %v416
        %v418 = vrot.slane %v404, %v417
        %419 = vrot.lane.b32.xlu0 %v418, 64
        %v420 = vpop.permute.xlu0 %419
        %v421 = vsel %vm182, %v420, 0
        %423 = vmatprep.subr.mxu0 0.0
        %424 = vmatpush1.msra.mxu0 0.0
        %425 = vmatprep.subr.mxu0 0.0
        %426 = vmatpush1.msra.mxu0 0.0
        %427 = vmatprep.subr.mxu0 0.0
        %428 = vmatpush1.msra.mxu0 0.0
        %429 = vmatprep.subr.mxu0 0.0
        %430 = vmatpush1.msra.mxu0 0.0
        %431 = vmatprep.subr.mxu0 0.0
        %432 = vmatpush1.msra.mxu0 0.0
        %433 = vmatprep.subr.mxu0 0.0
        %434 = vmatpush1.msra.mxu0 0.0
        %435 = vmatprep.subr.mxu0 0.0
        %436 = vmatpush1.msra.mxu0 0.0
        %437 = vmatprep.subr.mxu0 0.0
        %438 = vmatpush1.msra.mxu0 0.0
        %439 = vmatprep.subr.mxu0 0.0
        %440 = vmatpush1.msra.mxu0 0.0
        %441 = vmatprep.subr.mxu0 0.0
        %442 = vmatpush1.msra.mxu0 0.0
        %443 = vmatprep.subr.mxu0 0.0
        %444 = vmatpush1.msra.mxu0 0.0
        %445 = vmatprep.subr.mxu0 0.0
        %446 = vmatpush1.msra.mxu0 0.0
        %447 = vmatprep.subr.mxu0 0.0
        %448 = vmatpush1.msra.mxu0 %v178
        %449 = vmatprep.subr.mxu0 0.0
        %450 = vmatpush1.msra.mxu0 %v177
        %451 = vmatprep.subr.mxu0 0.0
        %452 = vmatpush1.msra.mxu0 %v176
        %453 = vmatprep.subr.mxu0 0.0
        %454 = vmatpush1.msra.mxu0 %v175
        %455 = vmatprep.subr.mxu0 0.0
        %456 = vmatpush2.msra.mxu0 0.0
        %457 = vmatprep.subr.mxu0 0.0
        %458 = vmatpush2.msra.mxu0 0.0
        %459 = vmatprep.subr.mxu0 0.0
        %460 = vmatpush2.msra.mxu0 0.0
        %461 = vmatprep.subr.mxu0 0.0
        %462 = vmatpush2.msra.mxu0 0.0
        %463 = vmatprep.subr.mxu0 0.0
        %464 = vmatpush2.msra.mxu0 0.0
        %465 = vmatprep.subr.mxu0 0.0
        %466 = vmatpush2.msra.mxu0 0.0
        %467 = vmatprep.subr.mxu0 0.0
        %468 = vmatpush2.msra.mxu0 0.0
        %469 = vmatprep.subr.mxu0 0.0
        %470 = vmatpush2.msra.mxu0 0.0
        %471 = vmatprep.subr.mxu0 0.0
        %472 = vmatpush2.msra.mxu0 0.0
        %473 = vmatprep.subr.mxu0 0.0
        %474 = vmatpush2.msra.mxu0 0.0
        %475 = vmatprep.subr.mxu0 0.0
        %476 = vmatpush2.msra.mxu0 0.0
        %477 = vmatprep.subr.mxu0 0.0
        %478 = vmatpush2.msra.mxu0 0.0
        %479 = vmatprep.subr.mxu0 0.0
        %480 = vmatpush2.msra.mxu0 0.0
        %481 = vmatprep.subr.mxu0 0.0
        %482 = vmatpush2.msra.mxu0 0.0
        %483 = vmatprep.subr.mxu0 0.0
        %484 = vmatpush2.msra.mxu0 0.0
        %485 = vmatprep.subr.mxu0 0.0
        %486 = vmatpush2.msra.mxu0 0.0
        %487 = vmatprep.mubr.f32.mxu0 0.0
        %488 = vmatmul.mubr.f32.gmra.mxu0 %v421
        %v489 = vpop.f32.mrf.mxu0
        %v490 = vadd.f32 0.0, %v489
        %v491 = vpop.f32.mrf.mxu0
        %492 = vdwg.mxu0
        %v493 = vadd.f32 %v411, %v490
        %v494 = vxor.u32 %v493, 2147483648
        %v495 = vmul.f32 %v494, 1.442695
        %v496 = vpow.pop %v495
        %v497 = vadd.f32 %v496, 1.0
        %v498 = vrcp.pop %v497
        %v499 = vmul.f32 1.0, %v498
        %v500 = vtanh.pop %v493
        %v501 = vmul.f32 %v499, %v398
        %503 = vrot.lane.b32.xlu0 %v500, 32
        %v504 = vpop.permute.xlu0 %503
        %v506 = vmul.f32 %v499, %v504
        %508 = vrot.lane.b32.xlu0 %v506, 32
        %v509 = vpop.permute.xlu0 %508
        %v511 = vadd.f32 %v501, %v509
        %v512 = vtanh.pop %v511
        %514 = vrot.lane.b32.xlu0 %v512, 32
        %v515 = vpop.permute.xlu0 %514
        %v517 = vmul.f32 %v499, %v515
        %vm518 = vcmask 779776
        %519 = vst.msk [vmem:[%s151] sm:$0x3] %vm518, %v517
        %v520 = vld [vmem:[%s133 + $0x6] sm:$0x3]
        %v523 = vunpack.c.l.s4 1983009808
        %v524 = vunpack.c.0.s8 %v523
        %v525 = vlaneseq
        %v526 = vshrl.u32 %v525, 7
        %v527 = vsub.s32 %v524, %v526
        %v528 = vrot.slane %v517, %v527
        %529 = vrot.lane.b32.xlu0 %v528, 64
        %v530 = vpop.permute.xlu0 %529
        %v531 = vsel %vm182, %v530, 0
        %533 = vmatprep.subr.mxu0 0.0
        %534 = vmatpush1.msra.mxu0 0.0
        %535 = vmatprep.subr.mxu0 0.0
        %536 = vmatpush1.msra.mxu0 0.0
        %537 = vmatprep.subr.mxu0 0.0
        %538 = vmatpush1.msra.mxu0 0.0
        %539 = vmatprep.subr.mxu0 0.0
        %540 = vmatpush1.msra.mxu0 0.0
        %541 = vmatprep.subr.mxu0 0.0
        %542 = vmatpush1.msra.mxu0 0.0
        %543 = vmatprep.subr.mxu0 0.0
        %544 = vmatpush1.msra.mxu0 0.0
        %545 = vmatprep.subr.mxu0 0.0
        %546 = vmatpush1.msra.mxu0 0.0
        %547 = vmatprep.subr.mxu0 0.0
        %548 = vmatpush1.msra.mxu0 0.0
        %549 = vmatprep.subr.mxu0 0.0
        %550 = vmatpush1.msra.mxu0 0.0
        %551 = vmatprep.subr.mxu0 0.0
        %552 = vmatpush1.msra.mxu0 0.0
        %553 = vmatprep.subr.mxu0 0.0
        %554 = vmatpush1.msra.mxu0 0.0
        %555 = vmatprep.subr.mxu0 0.0
        %556 = vmatpush1.msra.mxu0 0.0
        %557 = vmatprep.subr.mxu0 0.0
        %558 = vmatpush1.msra.mxu0 %v178
        %559 = vmatprep.subr.mxu0 0.0
        %560 = vmatpush1.msra.mxu0 %v177
        %561 = vmatprep.subr.mxu0 0.0
        %562 = vmatpush1.msra.mxu0 %v176
        %563 = vmatprep.subr.mxu0 0.0
        %564 = vmatpush1.msra.mxu0 %v175
        %565 = vmatprep.subr.mxu0 0.0
        %566 = vmatpush2.msra.mxu0 0.0
        %567 = vmatprep.subr.mxu0 0.0
        %568 = vmatpush2.msra.mxu0 0.0
        %569 = vmatprep.subr.mxu0 0.0
        %570 = vmatpush2.msra.mxu0 0.0
        %571 = vmatprep.subr.mxu0 0.0
        %572 = vmatpush2.msra.mxu0 0.0
        %573 = vmatprep.subr.mxu0 0.0
        %574 = vmatpush2.msra.mxu0 0.0
        %575 = vmatprep.subr.mxu0 0.0
        %576 = vmatpush2.msra.mxu0 0.0
        %577 = vmatprep.subr.mxu0 0.0
        %578 = vmatpush2.msra.mxu0 0.0
        %579 = vmatprep.subr.mxu0 0.0
        %580 = vmatpush2.msra.mxu0 0.0
        %581 = vmatprep.subr.mxu0 0.0
        %582 = vmatpush2.msra.mxu0 0.0
        %583 = vmatprep.subr.mxu0 0.0
        %584 = vmatpush2.msra.mxu0 0.0
        %585 = vmatprep.subr.mxu0 0.0
        %586 = vmatpush2.msra.mxu0 0.0
        %587 = vmatprep.subr.mxu0 0.0
        %588 = vmatpush2.msra.mxu0 0.0
        %589 = vmatprep.subr.mxu0 0.0
        %590 = vmatpush2.msra.mxu0 0.0
        %591 = vmatprep.subr.mxu0 0.0
        %592 = vmatpush2.msra.mxu0 0.0
        %593 = vmatprep.subr.mxu0 0.0
        %594 = vmatpush2.msra.mxu0 0.0
        %595 = vmatprep.subr.mxu0 0.0
        %596 = vmatpush2.msra.mxu0 0.0
        %597 = vmatprep.mubr.f32.mxu0 0.0
        %598 = vmatmul.mubr.f32.gmra.mxu0 %v531
        %v599 = vpop.f32.mrf.mxu0
        %v600 = vadd.f32 0.0, %v599
        %v601 = vpop.f32.mrf.mxu0
        %602 = vdwg.mxu0
        %v603 = vadd.f32 %v520, %v600
        %v604 = vxor.u32 %v603, 2147483648
        %v605 = vmul.f32 %v604, 1.442695
        %v606 = vpow.pop %v605
        %v607 = vadd.f32 %v606, 1.0
        %v608 = vrcp.pop %v607
        %v609 = vmul.f32 1.0, %v608
        %v610 = vtanh.pop %v603
        %v611 = vmul.f32 %v609, %v511
        %613 = vrot.lane.b32.xlu0 %v610, 32
        %v614 = vpop.permute.xlu0 %613
        %v616 = vmul.f32 %v609, %v614
        %618 = vrot.lane.b32.xlu0 %v616, 32
        %v619 = vpop.permute.xlu0 %618
        %v621 = vadd.f32 %v611, %v619
        %v622 = vtanh.pop %v621
        %624 = vrot.lane.b32.xlu0 %v622, 32
        %v625 = vpop.permute.xlu0 %624
        %v627 = vmul.f32 %v609, %v625
        %629 = vrot.lane.b32.xlu0 %v627, 32
        %v630 = vpop.permute.xlu0 %629
        %vm632 = vcmask 1042176
        %633 = vst.msk [vmem:[%s151] sm:$0x3] %vm632, %v630
        %v634 = vld [vmem:[%s133 + $0x8] sm:$0x3]
        %v636 = vunpack.c.l.s4 1983009808
        %v637 = vunpack.c.0.s8 %v636
        %v638 = vlaneseq
        %v639 = vshrl.u32 %v638, 7
        %v640 = vsub.s32 %v637, %v639
        %v641 = vrot.slane %v627, %v640
        %642 = vrot.lane.b32.xlu0 %v641, 64
        %v643 = vpop.permute.xlu0 %642
        %v644 = vsel %vm182, %v643, 0
        %646 = vmatprep.subr.mxu0 0.0
        %647 = vmatpush1.msra.mxu0 0.0
        %648 = vmatprep.subr.mxu0 0.0
        %649 = vmatpush1.msra.mxu0 0.0
        %650 = vmatprep.subr.mxu0 0.0
        %651 = vmatpush1.msra.mxu0 0.0
        %652 = vmatprep.subr.mxu0 0.0
        %653 = vmatpush1.msra.mxu0 0.0
        %654 = vmatprep.subr.mxu0 0.0
        %655 = vmatpush1.msra.mxu0 0.0
        %656 = vmatprep.subr.mxu0 0.0
        %657 = vmatpush1.msra.mxu0 0.0
        %658 = vmatprep.subr.mxu0 0.0
        %659 = vmatpush1.msra.mxu0 0.0
        %660 = vmatprep.subr.mxu0 0.0
        %661 = vmatpush1.msra.mxu0 0.0
        %662 = vmatprep.subr.mxu0 0.0
        %663 = vmatpush1.msra.mxu0 0.0
        %664 = vmatprep.subr.mxu0 0.0
        %665 = vmatpush1.msra.mxu0 0.0
        %666 = vmatprep.subr.mxu0 0.0
        %667 = vmatpush1.msra.mxu0 0.0
        %668 = vmatprep.subr.mxu0 0.0
        %669 = vmatpush1.msra.mxu0 0.0
        %670 = vmatprep.subr.mxu0 0.0
        %671 = vmatpush1.msra.mxu0 %v178
        %672 = vmatprep.subr.mxu0 0.0
        %673 = vmatpush1.msra.mxu0 %v177
        %674 = vmatprep.subr.mxu0 0.0
        %675 = vmatpush1.msra.mxu0 %v176
        %676 = vmatprep.subr.mxu0 0.0
        %677 = vmatpush1.msra.mxu0 %v175
        %678 = vmatprep.subr.mxu0 0.0
        %679 = vmatpush2.msra.mxu0 0.0
        %680 = vmatprep.subr.mxu0 0.0
        %681 = vmatpush2.msra.mxu0 0.0
        %682 = vmatprep.subr.mxu0 0.0
        %683 = vmatpush2.msra.mxu0 0.0
        %684 = vmatprep.subr.mxu0 0.0
        %685 = vmatpush2.msra.mxu0 0.0
        %686 = vmatprep.subr.mxu0 0.0
        %687 = vmatpush2.msra.mxu0 0.0
        %688 = vmatprep.subr.mxu0 0.0
        %689 = vmatpush2.msra.mxu0 0.0
        %690 = vmatprep.subr.mxu0 0.0
        %691 = vmatpush2.msra.mxu0 0.0
        %692 = vmatprep.subr.mxu0 0.0
        %693 = vmatpush2.msra.mxu0 0.0
        %694 = vmatprep.subr.mxu0 0.0
        %695 = vmatpush2.msra.mxu0 0.0
        %696 = vmatprep.subr.mxu0 0.0
        %697 = vmatpush2.msra.mxu0 0.0
        %698 = vmatprep.subr.mxu0 0.0
        %699 = vmatpush2.msra.mxu0 0.0
        %700 = vmatprep.subr.mxu0 0.0
        %701 = vmatpush2.msra.mxu0 0.0
        %702 = vmatprep.subr.mxu0 0.0
        %703 = vmatpush2.msra.mxu0 0.0
        %704 = vmatprep.subr.mxu0 0.0
        %705 = vmatpush2.msra.mxu0 0.0
        %706 = vmatprep.subr.mxu0 0.0
        %707 = vmatpush2.msra.mxu0 0.0
        %708 = vmatprep.subr.mxu0 0.0
        %709 = vmatpush2.msra.mxu0 0.0
        %710 = vmatprep.mubr.f32.mxu0 0.0
        %711 = vmatmul.mubr.f32.gmra.mxu0 %v644
        %v712 = vpop.f32.mrf.mxu0
        %v713 = vadd.f32 0.0, %v712
        %v714 = vpop.f32.mrf.mxu0
        %715 = vdwg.mxu0
        %v716 = vadd.f32 %v634, %v713
        %v717 = vxor.u32 %v716, 2147483648
        %v718 = vmul.f32 %v717, 1.442695
        %v719 = vpow.pop %v718
        %v720 = vadd.f32 %v719, 1.0
        %v721 = vrcp.pop %v720
        %v722 = vmul.f32 1.0, %v721
        %v723 = vtanh.pop %v716
        %v724 = vmul.f32 %v722, %v621
        %726 = vrot.lane.b32.xlu0 %v723, 32
        %v727 = vpop.permute.xlu0 %726
        %v729 = vmul.f32 %v722, %v727
        %731 = vrot.lane.b32.xlu0 %v729, 32
        %v732 = vpop.permute.xlu0 %731
        %v734 = vadd.f32 %v724, %v732
        %v735 = vtanh.pop %v734
        %737 = vrot.lane.b32.xlu0 %v735, 32
        %v738 = vpop.permute.xlu0 %737
        %v740 = vmul.f32 %v722, %v738
        %742 = vrot.lane.b32.xlu0 %v740, 64
        %v743 = vpop.permute.xlu0 %742
        %745 = vst.msk [vmem:[%s151 + $0x2] sm:$0x3] %vm296, %v743
        %v746 = vld [vmem:[%s133 + $0xa] sm:$0x3]
        %v748 = vunpack.c.l.s4 1983009808
        %v749 = vunpack.c.0.s8 %v748
        %v750 = vlaneseq
        %v751 = vshrl.u32 %v750, 7
        %v752 = vsub.s32 %v749, %v751
        %v753 = vrot.slane %v740, %v752
        %754 = vrot.lane.b32.xlu0 %v753, 64
        %v755 = vpop.permute.xlu0 %754
        %v756 = vsel %vm182, %v755, 0
        %758 = vmatprep.subr.mxu0 0.0
        %759 = vmatpush1.msra.mxu0 0.0
        %760 = vmatprep.subr.mxu0 0.0
        %761 = vmatpush1.msra.mxu0 0.0
        %762 = vmatprep.subr.mxu0 0.0
        %763 = vmatpush1.msra.mxu0 0.0
        %764 = vmatprep.subr.mxu0 0.0
        %765 = vmatpush1.msra.mxu0 0.0
        %766 = vmatprep.subr.mxu0 0.0
        %767 = vmatpush1.msra.mxu0 0.0
        %768 = vmatprep.subr.mxu0 0.0
        %769 = vmatpush1.msra.mxu0 0.0
        %770 = vmatprep.subr.mxu0 0.0
        %771 = vmatpush1.msra.mxu0 0.0
        %772 = vmatprep.subr.mxu0 0.0
        %773 = vmatpush1.msra.mxu0 0.0
        %774 = vmatprep.subr.mxu0 0.0
        %775 = vmatpush1.msra.mxu0 0.0
        %776 = vmatprep.subr.mxu0 0.0
        %777 = vmatpush1.msra.mxu0 0.0
        %778 = vmatprep.subr.mxu0 0.0
        %779 = vmatpush1.msra.mxu0 0.0
        %780 = vmatprep.subr.mxu0 0.0
        %781 = vmatpush1.msra.mxu0 0.0
        %782 = vmatprep.subr.mxu0 0.0
        %783 = vmatpush1.msra.mxu0 %v178
        %784 = vmatprep.subr.mxu0 0.0
        %785 = vmatpush1.msra.mxu0 %v177
        %786 = vmatprep.subr.mxu0 0.0
        %787 = vmatpush1.msra.mxu0 %v176
        %788 = vmatprep.subr.mxu0 0.0
        %789 = vmatpush1.msra.mxu0 %v175
        %790 = vmatprep.subr.mxu0 0.0
        %791 = vmatpush2.msra.mxu0 0.0
        %792 = vmatprep.subr.mxu0 0.0
        %793 = vmatpush2.msra.mxu0 0.0
        %794 = vmatprep.subr.mxu0 0.0
        %795 = vmatpush2.msra.mxu0 0.0
        %796 = vmatprep.subr.mxu0 0.0
        %797 = vmatpush2.msra.mxu0 0.0
        %798 = vmatprep.subr.mxu0 0.0
        %799 = vmatpush2.msra.mxu0 0.0
        %800 = vmatprep.subr.mxu0 0.0
        %801 = vmatpush2.msra.mxu0 0.0
        %802 = vmatprep.subr.mxu0 0.0
        %803 = vmatpush2.msra.mxu0 0.0
        %804 = vmatprep.subr.mxu0 0.0
        %805 = vmatpush2.msra.mxu0 0.0
        %806 = vmatprep.subr.mxu0 0.0
        %807 = vmatpush2.msra.mxu0 0.0
        %808 = vmatprep.subr.mxu0 0.0
        %809 = vmatpush2.msra.mxu0 0.0
        %810 = vmatprep.subr.mxu0 0.0
        %811 = vmatpush2.msra.mxu0 0.0
        %812 = vmatprep.subr.mxu0 0.0
        %813 = vmatpush2.msra.mxu0 0.0
        %814 = vmatprep.subr.mxu0 0.0
        %815 = vmatpush2.msra.mxu0 0.0
        %816 = vmatprep.subr.mxu0 0.0
        %817 = vmatpush2.msra.mxu0 0.0
        %818 = vmatprep.subr.mxu0 0.0
        %819 = vmatpush2.msra.mxu0 0.0
        %820 = vmatprep.subr.mxu0 0.0
        %821 = vmatpush2.msra.mxu0 0.0
        %822 = vmatprep.mubr.f32.mxu0 0.0
        %823 = vmatmul.mubr.f32.gmra.mxu0 %v756
        %v824 = vpop.f32.mrf.mxu0
        %v825 = vadd.f32 0.0, %v824
        %v826 = vpop.f32.mrf.mxu0
        %827 = vdwg.mxu0
        %v828 = vadd.f32 %v746, %v825
        %v829 = vxor.u32 %v828, 2147483648
        %v830 = vmul.f32 %v829, 1.442695
        %v831 = vpow.pop %v830
        %v832 = vadd.f32 %v831, 1.0
        %v833 = vrcp.pop %v832
        %v834 = vmul.f32 1.0, %v833
        %v835 = vtanh.pop %v828
        %v836 = vmul.f32 %v834, %v734
        %838 = vrot.lane.b32.xlu0 %v835, 32
        %v839 = vpop.permute.xlu0 %838
        %v841 = vmul.f32 %v834, %v839
        %843 = vrot.lane.b32.xlu0 %v841, 32
        %v844 = vpop.permute.xlu0 %843
        %v846 = vadd.f32 %v836, %v844
        %v847 = vtanh.pop %v846
        %849 = vrot.lane.b32.xlu0 %v847, 32
        %v850 = vpop.permute.xlu0 %849
        %v852 = vmul.f32 %v834, %v850
        %854 = vrot.lane.b32.xlu0 %v852, 96
        %v855 = vpop.permute.xlu0 %854
        %857 = vst.msk [vmem:[%s151 + $0x2] sm:$0x3] %vm409, %v855
        %v858 = vld [vmem:[%s133 + $0xc] sm:$0x3]
        %v860 = vunpack.c.l.s4 1983009808
        %v861 = vunpack.c.0.s8 %v860
        %v862 = vlaneseq
        %v863 = vshrl.u32 %v862, 7
        %v864 = vsub.s32 %v861, %v863
        %v865 = vrot.slane %v852, %v864
        %866 = vrot.lane.b32.xlu0 %v865, 64
        %v867 = vpop.permute.xlu0 %866
        %v868 = vsel %vm182, %v867, 0
        %870 = vmatprep.subr.mxu0 0.0
        %871 = vmatpush1.msra.mxu0 0.0
        %872 = vmatprep.subr.mxu0 0.0
        %873 = vmatpush1.msra.mxu0 0.0
        %874 = vmatprep.subr.mxu0 0.0
        %875 = vmatpush1.msra.mxu0 0.0
        %876 = vmatprep.subr.mxu0 0.0
        %877 = vmatpush1.msra.mxu0 0.0
        %878 = vmatprep.subr.mxu0 0.0
        %879 = vmatpush1.msra.mxu0 0.0
        %880 = vmatprep.subr.mxu0 0.0
        %881 = vmatpush1.msra.mxu0 0.0
        %882 = vmatprep.subr.mxu0 0.0
        %883 = vmatpush1.msra.mxu0 0.0
        %884 = vmatprep.subr.mxu0 0.0
        %885 = vmatpush1.msra.mxu0 0.0
        %886 = vmatprep.subr.mxu0 0.0
        %887 = vmatpush1.msra.mxu0 0.0
        %888 = vmatprep.subr.mxu0 0.0
        %889 = vmatpush1.msra.mxu0 0.0
        %890 = vmatprep.subr.mxu0 0.0
        %891 = vmatpush1.msra.mxu0 0.0
        %892 = vmatprep.subr.mxu0 0.0
        %893 = vmatpush1.msra.mxu0 0.0
        %894 = vmatprep.subr.mxu0 0.0
        %895 = vmatpush1.msra.mxu0 %v178
        %896 = vmatprep.subr.mxu0 0.0
        %897 = vmatpush1.msra.mxu0 %v177
        %898 = vmatprep.subr.mxu0 0.0
        %899 = vmatpush1.msra.mxu0 %v176
        %900 = vmatprep.subr.mxu0 0.0
        %901 = vmatpush1.msra.mxu0 %v175
        %902 = vmatprep.subr.mxu0 0.0
        %903 = vmatpush2.msra.mxu0 0.0
        %904 = vmatprep.subr.mxu0 0.0
        %905 = vmatpush2.msra.mxu0 0.0
        %906 = vmatprep.subr.mxu0 0.0
        %907 = vmatpush2.msra.mxu0 0.0
        %908 = vmatprep.subr.mxu0 0.0
        %909 = vmatpush2.msra.mxu0 0.0
        %910 = vmatprep.subr.mxu0 0.0
        %911 = vmatpush2.msra.mxu0 0.0
        %912 = vmatprep.subr.mxu0 0.0
        %913 = vmatpush2.msra.mxu0 0.0
        %914 = vmatprep.subr.mxu0 0.0
        %915 = vmatpush2.msra.mxu0 0.0
        %916 = vmatprep.subr.mxu0 0.0
        %917 = vmatpush2.msra.mxu0 0.0
        %918 = vmatprep.subr.mxu0 0.0
        %919 = vmatpush2.msra.mxu0 0.0
        %920 = vmatprep.subr.mxu0 0.0
        %921 = vmatpush2.msra.mxu0 0.0
        %922 = vmatprep.subr.mxu0 0.0
        %923 = vmatpush2.msra.mxu0 0.0
        %924 = vmatprep.subr.mxu0 0.0
        %925 = vmatpush2.msra.mxu0 0.0
        %926 = vmatprep.subr.mxu0 0.0
        %927 = vmatpush2.msra.mxu0 0.0
        %928 = vmatprep.subr.mxu0 0.0
        %929 = vmatpush2.msra.mxu0 0.0
        %930 = vmatprep.subr.mxu0 0.0
        %931 = vmatpush2.msra.mxu0 0.0
        %932 = vmatprep.subr.mxu0 0.0
        %933 = vmatpush2.msra.mxu0 0.0
        %934 = vmatprep.mubr.f32.mxu0 0.0
        %935 = vmatmul.mubr.f32.gmra.mxu0 %v868
        %v936 = vpop.f32.mrf.mxu0
        %v937 = vadd.f32 0.0, %v936
        %v938 = vpop.f32.mrf.mxu0
        %939 = vdwg.mxu0
        %v940 = vadd.f32 %v858, %v937
        %v941 = vxor.u32 %v940, 2147483648
        %v942 = vmul.f32 %v941, 1.442695
        %v943 = vpow.pop %v942
        %v944 = vadd.f32 %v943, 1.0
        %v945 = vrcp.pop %v944
        %v946 = vmul.f32 1.0, %v945
        %v947 = vtanh.pop %v940
        %v948 = vmul.f32 %v946, %v846
        %950 = vrot.lane.b32.xlu0 %v947, 32
        %v951 = vpop.permute.xlu0 %950
        %v953 = vmul.f32 %v946, %v951
        %955 = vrot.lane.b32.xlu0 %v953, 32
        %v956 = vpop.permute.xlu0 %955
        %v958 = vadd.f32 %v948, %v956
        %v959 = vtanh.pop %v958
        %961 = vrot.lane.b32.xlu0 %v959, 32
        %v962 = vpop.permute.xlu0 %961
        %v964 = vmul.f32 %v946, %v962
        %965 = vst.msk [vmem:[%s151 + $0x2] sm:$0x3] %vm518, %v964
        %v966 = vld [vmem:[%s133 + $0xe] sm:$0x3]
        %v969 = vunpack.c.l.s4 1983009808
        %v970 = vunpack.c.0.s8 %v969
        %v971 = vlaneseq
        %v972 = vshrl.u32 %v971, 7
        %v973 = vsub.s32 %v970, %v972
        %v974 = vrot.slane %v964, %v973
        %975 = vrot.lane.b32.xlu0 %v974, 64
        %v976 = vpop.permute.xlu0 %975
        %v977 = vsel %vm182, %v976, 0
        %979 = vmatprep.subr.mxu0 0.0
        %980 = vmatpush1.msra.mxu0 0.0
        %981 = vmatprep.subr.mxu0 0.0
        %982 = vmatpush1.msra.mxu0 0.0
        %983 = vmatprep.subr.mxu0 0.0
        %984 = vmatpush1.msra.mxu0 0.0
        %985 = vmatprep.subr.mxu0 0.0
        %986 = vmatpush1.msra.mxu0 0.0
        %987 = vmatprep.subr.mxu0 0.0
        %988 = vmatpush1.msra.mxu0 0.0
        %989 = vmatprep.subr.mxu0 0.0
        %990 = vmatpush1.msra.mxu0 0.0
        %991 = vmatprep.subr.mxu0 0.0
        %992 = vmatpush1.msra.mxu0 0.0
        %993 = vmatprep.subr.mxu0 0.0
        %994 = vmatpush1.msra.mxu0 0.0
        %995 = vmatprep.subr.mxu0 0.0
        %996 = vmatpush1.msra.mxu0 0.0
        %997 = vmatprep.subr.mxu0 0.0
        %998 = vmatpush1.msra.mxu0 0.0
        %999 = vmatprep.subr.mxu0 0.0
        %1000 = vmatpush1.msra.mxu0 0.0
        %1001 = vmatprep.subr.mxu0 0.0
        %1002 = vmatpush1.msra.mxu0 0.0
        %1003 = vmatprep.subr.mxu0 0.0
        %1004 = vmatpush1.msra.mxu0 %v178
        %1005 = vmatprep.subr.mxu0 0.0
        %1006 = vmatpush1.msra.mxu0 %v177
        %1007 = vmatprep.subr.mxu0 0.0
        %1008 = vmatpush1.msra.mxu0 %v176
        %1009 = vmatprep.subr.mxu0 0.0
        %1010 = vmatpush1.msra.mxu0 %v175
        %1011 = vmatprep.subr.mxu0 0.0
        %1012 = vmatpush2.msra.mxu0 0.0
        %1013 = vmatprep.subr.mxu0 0.0
        %1014 = vmatpush2.msra.mxu0 0.0
        %1015 = vmatprep.subr.mxu0 0.0
        %1016 = vmatpush2.msra.mxu0 0.0
        %1017 = vmatprep.subr.mxu0 0.0
        %1018 = vmatpush2.msra.mxu0 0.0
        %1019 = vmatprep.subr.mxu0 0.0
        %1020 = vmatpush2.msra.mxu0 0.0
        %1021 = vmatprep.subr.mxu0 0.0
        %1022 = vmatpush2.msra.mxu0 0.0
        %1023 = vmatprep.subr.mxu0 0.0
        %1024 = vmatpush2.msra.mxu0 0.0
        %1025 = vmatprep.subr.mxu0 0.0
        %1026 = vmatpush2.msra.mxu0 0.0
        %1027 = vmatprep.subr.mxu0 0.0
        %1028 = vmatpush2.msra.mxu0 0.0
        %1029 = vmatprep.subr.mxu0 0.0
        %1030 = vmatpush2.msra.mxu0 0.0
        %1031 = vmatprep.subr.mxu0 0.0
        %1032 = vmatpush2.msra.mxu0 0.0
        %1033 = vmatprep.subr.mxu0 0.0
        %1034 = vmatpush2.msra.mxu0 0.0
        %1035 = vmatprep.subr.mxu0 0.0
        %1036 = vmatpush2.msra.mxu0 0.0
        %1037 = vmatprep.subr.mxu0 0.0
        %1038 = vmatpush2.msra.mxu0 0.0
        %1039 = vmatprep.subr.mxu0 0.0
        %1040 = vmatpush2.msra.mxu0 0.0
        %1041 = vmatprep.subr.mxu0 0.0
        %1042 = vmatpush2.msra.mxu0 0.0
        %1043 = vmatprep.mubr.f32.mxu0 0.0
        %1044 = vmatmul.mubr.f32.gmra.mxu0 %v977
        %v1045 = vpop.f32.mrf.mxu0
        %v1046 = vadd.f32 0.0, %v1045
        %v1047 = vpop.f32.mrf.mxu0
        %1048 = vdwg.mxu0
        %v1049 = vadd.f32 %v966, %v1046
        %v1050 = vxor.u32 %v1049, 2147483648
        %v1051 = vmul.f32 %v1050, 1.442695
        %v1052 = vpow.pop %v1051
        %v1053 = vadd.f32 %v1052, 1.0
        %v1054 = vrcp.pop %v1053
        %v1055 = vmul.f32 1.0, %v1054
        %v1056 = vtanh.pop %v1049
        %v1057 = vmul.f32 %v1055, %v958
        %1059 = vrot.lane.b32.xlu0 %v1056, 32
        %v1060 = vpop.permute.xlu0 %1059
        %v1062 = vmul.f32 %v1055, %v1060
        %1064 = vrot.lane.b32.xlu0 %v1062, 32
        %v1065 = vpop.permute.xlu0 %1064
        %v1067 = vadd.f32 %v1057, %v1065
        %v1068 = vtanh.pop %v1067
        %1070 = vrot.lane.b32.xlu0 %v1068, 32
        %v1071 = vpop.permute.xlu0 %1070
        %v1073 = vmul.f32 %v1055, %v1071
        %1075 = vrot.lane.b32.xlu0 %v1073, 32
        %v1076 = vpop.permute.xlu0 %1075
        %1078 = vst.msk [vmem:[%s151 + $0x2] sm:$0x3] %vm632, %v1076
        %v1080 = vunpack.c.l.s4 1983009808
        %v1081 = vunpack.c.0.s8 %v1080
        %v1082 = vlaneseq
        %v1083 = vshrl.u32 %v1082, 7
        %v1084 = vsub.s32 %v1081, %v1083
        %v1085 = vrot.slane %v1073, %v1084
        %1086 = vrot.lane.b32.xlu0 %v1085, 64
        %v1087 = vpop.permute.xlu0 %1086
        %1089 = vst.msk [vmem:[#allocation2] sm:$0x3] %vm296, %v1087
        %v1092 = vunpack.c.l.s4 1983009808
        %v1093 = vunpack.c.0.s8 %v1092
        %v1094 = vlaneseq
        %v1095 = vshrl.u32 %v1094, 7
        %v1096 = vsub.s32 %v1093, %v1095
        %v1097 = vrot.slane %v1067, %v1096
        %1098 = vrot.lane.b32.xlu0 %v1097, 96
        %v1099 = vpop.permute.xlu0 %1098
        %1101 = vst.msk [vmem:[#allocation3] sm:$0x3] %vm296, %v1099
        %s1102 = sand.u32 %s69, 1
        %s1103 = scalar_lea.sflag [#allocation8], %s1102
        %s1104 = sand.u32 %s69, 1
        %s1105 = smul.addr %s1104, 4
        %s1106 = scalar_lea.vmem [#allocation9], %s1105
        // Predicated region
        $region37: #{tpu_custom_call.1} parent=23 // pred_check
          %p1107 = pneg %p79
        $region38: #{tpu_custom_call.1} parent=23 // pred_check_branch
          %1109 = sbr.rel (%p1107) target = $region40
        $region39: #{tpu_custom_call.1} parent=23 // pred_region
          %s1110 = smul.u32 2, %s24
          %s1112 = ssub.s32 64, 64
          %1113 = vsyncadd %s1103, %s1112
          %s1114 = smul.addr %s23, 4
          %s1115 = sadd.s32 %s1110, %s1114
          %s1116 = smul.addr %s1115, 32
          %s1117 = scalar_lea.hbm %s2, %s1116
          %s1119 = sshll.u32 %s1106, 4
          %s1120 = int_to_ptr.vmem [resolvable:$true] %s1119
          %1122 = dma.vmem_to_hbm [thread:$0]  %s1120, 64, %s1117, %s1103
        $region40: #{tpu_custom_call.1} parent=23 // pred_fallthru
          _
      $region24: #{tpu_custom_call.1} parent=5 // pred_fallthru
        _
      %p1123 = scmp.le.s32.totalorder 2, %s14
      // Predicated region
      $region41: #{tpu_custom_call.1} parent=5 // pred_check
        %p1124 = pneg %p1123
      $region42: #{tpu_custom_call.1} parent=5 // pred_check_branch
        %1126 = sbr.rel (%p1124) target = $region44
      $region43: #{tpu_custom_call.1} parent=5 // pred_region
        %s1127 = ssub.s32 %s14, 2
        // Predicated region
        $region45: #{tpu_custom_call.1} parent=43 // pred_check
          %p1128 = pneg %p85
        $region46: #{tpu_custom_call.1} parent=43 // pred_check_branch
          %1130 = sbr.rel (%p1128) target = $region48
        $region47: #{tpu_custom_call.1} parent=43 // pred_region
          %s1131 = sand.u32 %s70, 1
          %s1132 = scalar_lea.sflag [#allocation8], %s1131
          %s1133 = sand.u32 %s70, 1
          %s1134 = smul.addr %s1133, 4
          %s1135 = scalar_lea.vmem [#allocation9], %s1134
          %1136 = dma.done %s1132, 64
        $region48: #{tpu_custom_call.1} parent=43 // pred_fallthru
          _
      $region44: #{tpu_custom_call.1} parent=5 // pred_fallthru
        _
    $region6: #{tpu_custom_call.1} parent=1 // loop_footer
      %s18 = sadd.s32 1, %s14
    $region7: #{tpu_custom_call.1} parent=1 // loop_footer_branch
      %13 = sbr.rel target = $region3
    $region8: #{tpu_custom_call.1} parent=1 // loop_exit
      _
    %1137 = vsyncpa [#allocation7], 1
    %s1138 = scalar_lea.sflag [#allocation7], 1
    %1139 = vsyncpa %s1138, 1
    %1140 = vsyncpa [#allocation8], 1
    %s1141 = scalar_lea.sflag [#allocation8], 1
    %1142 = vsyncpa %s1141, 1
  %1143 = vsyncmov [#allocation5]
  %s1144 = vpop.sfrf %1143
  %p1145 = scmp.eq.s32.totalorder %s1144, 0
  %p1146 = pneg %p1145
  %1148 = shalt.err (%p1146)

</llo_original>
